<compile_context>
chip_gen: v5e
topology: v5e:2x2
jax: 0.10.0
libtpu: 0.0.40
codegen_flags: <defaults>
</compile_context>

<pallas_src>
import jax
import jax.numpy as jnp
from jax.experimental import pallas as pl
from jax.experimental.pallas import tpu as pltpu

HIDDEN_SIZE = 256   # real hidden size from the PyTorch module
VOCAB_SIZE = 64
SEQ_LEN = 8


def encoder_gru_seq_kernel(tok_ref,            # (T,) int32, SMEM (scalar prefetch)
                           emb_ref,            # (1, 1, H)  bf16  gathered row
                           h0_ref,             # (1, H)     f32   initial hidden
                           wih_ref,            # (H, 3H)    bf16  input->hidden
                           whh_ref,            # (H, 3H)    bf16  hidden->hidden
                           bias_x_ref,         # (1, 3H)    f32   [b_r, b_z, b_in]
                           b_hn_ref,           # (1, H)     f32   b_hh for n gate
                           out_ref,            # (1, 1, H)  f32   hidden at step t
                           h_scratch):         # (1, H)     f32   VMEM accumulator
    t = pl.program_id(0)
    H = h_scratch.shape[-1]

    @pl.when(t == 0)
    def _():
        h_scratch[...] = h0_ref[...]

    h = h_scratch[...]                                  # (1, H) f32
    x = emb_ref[0]                                      # (1, H) bf16

    # Two fused matmuls instead of six: (1, H) @ (H, 3H) -> (1, 3H), f32 acc.
    gi = jnp.dot(x, wih_ref[...], preferred_element_type=jnp.float32)
    gh = jnp.dot(h.astype(whh_ref.dtype), whh_ref[...],
                 preferred_element_type=jnp.float32)

    bx = bias_x_ref[...]                                # (1, 3H)
    b_hn = b_hn_ref[...]                                # (1, H)

    # Gate order r, z, n (PyTorch nn.GRU).  Static, 128-aligned lane slices.
    r = jax.nn.sigmoid(gi[:, 0:H] + gh[:, 0:H] + bx[:, 0:H])
    z = jax.nn.sigmoid(gi[:, H:2 * H] + gh[:, H:2 * H] + bx[:, H:2 * H])
    n = jnp.tanh(gi[:, 2 * H:] + bx[:, 2 * H:] + r * (gh[:, 2 * H:] + b_hn))

    h_new = (1.0 - z) * n + z * h                       # f32
    h_scratch[...] = h_new
    out_ref[...] = h_new[None].astype(out_ref.dtype)


def encoder_rnn_sequence(params, token_ids, hidden):
    """Run the EncoderRNN over a whole token sequence in ONE pallas_call.

    token_ids: (T,) int32
    hidden:    (1, 1, H) f32
    returns (outputs (T, 1, H) f32, final hidden (1, 1, H) f32)
    """
    H = hidden.shape[-1]
    T = token_ids.shape[0]
    h0 = hidden.reshape(1, H).astype(jnp.float32)

    grid_spec = pltpu.PrefetchScalarGridSpec(
        num_scalar_prefetch=1,
        grid=(T,),
        in_specs=[
            # Embedding row gather driven by the prefetched token ids; the
            # table stays in HBM, only one (1,1,H) row is DMA'd per step.
            pl.BlockSpec((1, 1, H), lambda t, tok: (tok[t], 0, 0)),
            # Constant index_maps -> DMA'd once, VMEM-resident across steps.
            pl.BlockSpec((1, H), lambda t, tok: (0, 0)),        # h0
            pl.BlockSpec((H, 3 * H), lambda t, tok: (0, 0)),    # w_ih
            pl.BlockSpec((H, 3 * H), lambda t, tok: (0, 0)),    # w_hh
            pl.BlockSpec((1, 3 * H), lambda t, tok: (0, 0)),    # fused biases
            pl.BlockSpec((1, H), lambda t, tok: (0, 0)),        # b_hh (n gate)
        ],
        out_specs=pl.BlockSpec((1, 1, H), lambda t, tok: (t, 0, 0)),
        scratch_shapes=[pltpu.VMEM((1, H), jnp.float32)],
    )

    outs = pl.pallas_call(
        encoder_gru_seq_kernel,
        out_shape=jax.ShapeDtypeStruct((T, 1, H), jnp.float32),
        grid_spec=grid_spec,
        compiler_params=pltpu.CompilerParams(
            dimension_semantics=("arbitrary",)),   # sequential recurrence
    )(token_ids.astype(jnp.int32), params["embedding"], h0,
      params["w_ih"], params["w_hh"], params["bias_x"], params["b_hn"])

    final_hidden = outs[-1].reshape(1, 1, H)
    return outs, final_hidden


def encoder_rnn_forward(params, token_id, hidden):
    """Mirrors EncoderRNN.forward for a single token (seq=1, batch=1)."""
    token_ids = jnp.reshape(token_id, (1,)).astype(jnp.int32)
    outs, h_new = encoder_rnn_sequence(params, token_ids, hidden)
    out = outs[0].reshape(1, 1, -1)
    return out, h_new


def init_params(key, vocab_size, hidden_size):
    """nn.Embedding / nn.GRU parameters, laid out for the fused kernel."""
    H = hidden_size
    k_emb, k_wih, k_whh, k_bih, k_bhh = jax.random.split(key, 5)
    bound = float(H) ** -0.5

    # nn.Embedding(V, H): N(0,1); stored (V, 1, H) bf16 so the gathered row is
    # a (1, 1, H) block (last two block dims == full array dims).
    embedding = jax.random.normal(k_emb, (vocab_size, 1, H),
                                  jnp.float32).astype(jnp.bfloat16)
    # nn.GRU weight_ih_l0 / weight_hh_l0 are (3H, H) in torch; stored here as
    # the transposed, gate-concatenated (H, 3H) so  x @ W  gives [r | z | n].
    w_ih = jax.random.uniform(k_wih, (H, 3 * H), jnp.float32,
                              -bound, bound).astype(jnp.bfloat16)
    w_hh = jax.random.uniform(k_whh, (H, 3 * H), jnp.float32,
                              -bound, bound).astype(jnp.bfloat16)
    b_ih = jax.random.uniform(k_bih, (1, 3 * H), jnp.float32, -bound, bound)
    b_hh = jax.random.uniform(k_bhh, (1, 3 * H), jnp.float32, -bound, bound)

    # Pre-sum r/z biases (b_ih + b_hh); keep b_hh_n separate (scaled by r).
    bias_x = jnp.concatenate(
        [b_ih[:, :2 * H] + b_hh[:, :2 * H], b_ih[:, 2 * H:]], axis=1)
    b_hn = b_hh[:, 2 * H:]
    return dict(embedding=embedding, w_ih=w_ih, w_hh=w_hh,
                bias_x=bias_x, b_hn=b_hn)


def _gru_sequence_reference(params, token_ids, hidden):
    """Pure-JAX reference with identical dtypes/fused layout (correctness)."""
    H = hidden.shape[-1]
    h = hidden.reshape(1, H).astype(jnp.float32)
    w_ih, w_hh = params["w_ih"], params["w_hh"]
    bias_x, b_hn = params["bias_x"], params["b_hn"]
    outs = []
    for tok in token_ids.tolist():
        x = params["embedding"][int(tok)]                       # (1, H) bf16
        gi = jnp.dot(x, w_ih, preferred_element_type=jnp.float32)
        gh = jnp.dot(h.astype(jnp.bfloat16), w_hh,
                     preferred_element_type=jnp.float32)
        r = jax.nn.sigmoid(gi[:, :H] + gh[:, :H] + bias_x[:, :H])
        z = jax.nn.sigmoid(gi[:, H:2 * H] + gh[:, H:2 * H] + bias_x[:, H:2 * H])
        n = jnp.tanh(gi[:, 2 * H:] + bias_x[:, 2 * H:] + r * (gh[:, 2 * H:] + b_hn))
        h = (1.0 - z) * n + z * h
        outs.append(h)
    return jnp.stack(outs, axis=0), h.reshape(1, 1, H)


if __name__ == "__main__":
    key = jax.random.PRNGKey(0)
    k_params, k_tok, k_hid = jax.random.split(key, 3)

    params = init_params(k_params, VOCAB_SIZE, HIDDEN_SIZE)
    token_ids = jax.random.randint(k_tok, (SEQ_LEN,), 0, VOCAB_SIZE,
                                   dtype=jnp.int32)
    # initHidden() would be zeros; random hidden exercises all gate paths.
    hidden0 = jax.random.normal(k_hid, (1, 1, HIDDEN_SIZE), jnp.float32)

    # Full-sequence encode: one pallas_call, time loop inside the kernel.
    outs, hidden_T = encoder_rnn_sequence(params, token_ids, hidden0)
    outs = jax.block_until_ready(outs)
    hidden_T = jax.block_until_ready(hidden_T)

    # Single-step forward() mirroring the PyTorch module signature.
    out1, hid1 = encoder_rnn_forward(params, token_ids[0], hidden0)
    out1 = jax.block_until_ready(out1)

    # Correctness check against pure-JAX reference.
    ref_outs, ref_hT = _gru_sequence_reference(params, token_ids, hidden0)
    assert outs.shape == (SEQ_LEN, 1, HIDDEN_SIZE)
    assert hidden_T.shape == (1, 1, HIDDEN_SIZE)
    assert out1.shape == (1, 1, HIDDEN_SIZE)
    assert jnp.allclose(outs, ref_outs, atol=1e-3, rtol=1e-3)
    assert jnp.allclose(hidden_T, ref_hT, atol=1e-3, rtol=1e-3)
    assert jnp.allclose(out1.reshape(1, HIDDEN_SIZE), ref_outs[0],
                        atol=1e-3, rtol=1e-3)

    print("KERNEL_OK")
</pallas_src>

<mosaic_0001>
module attributes {stable_mosaic.version = 11 : i64} {
  func.func @encoder_gru_seq_kernel(%arg0: i32, %arg1: memref<8xi32, #tpu.memory_space<smem>>, %arg2: memref<1x1x256xbf16, #tpu.memory_space<vmem>>, %arg3: memref<1x256xf32, #tpu.memory_space<vmem>>, %arg4: memref<256x768xbf16, #tpu.memory_space<vmem>>, %arg5: memref<256x768xbf16, #tpu.memory_space<vmem>>, %arg6: memref<1x768xf32, #tpu.memory_space<vmem>>, %arg7: memref<1x256xf32, #tpu.memory_space<vmem>>, %arg8: memref<1x1x256xf32, #tpu.memory_space<vmem>>, %arg9: memref<1x256xf32, #tpu.memory_space<vmem>>) attributes {dimension_semantics = [#tpu.dimension_semantics<arbitrary>], iteration_bounds = array<i64: 8>, scalar_prefetch = 1 : i64, scratch_operands = 1 : i64, tpu.core_type = #tpu.core_type<tc>, window_params = [{transform_indices = @transform_0, window_bounds = array<i64: 1, 1, 256>}, {pipeline_mode = #tpu.pipeline_mode<synchronous>, transform_indices = @transform_1, window_bounds = array<i64: 1, 256>}, {pipeline_mode = #tpu.pipeline_mode<synchronous>, transform_indices = @transform_2, window_bounds = array<i64: 256, 768>}, {pipeline_mode = #tpu.pipeline_mode<synchronous>, transform_indices = @transform_3, window_bounds = array<i64: 256, 768>}, {pipeline_mode = #tpu.pipeline_mode<synchronous>, transform_indices = @transform_4, window_bounds = array<i64: 1, 768>}, {pipeline_mode = #tpu.pipeline_mode<synchronous>, transform_indices = @transform_5, window_bounds = array<i64: 1, 256>}, {transform_indices = @transform_6, window_bounds = array<i64: 1, 1, 256>}]} {
    %c0_i32 = arith.constant 0 : i32
    %0 = arith.cmpi eq, %arg0, %c0_i32 : i32
    %1 = arith.extui %0 : i1 to i32
    %c0_i32_0 = arith.constant 0 : i32
    %2 = arith.cmpi ne, %1, %c0_i32_0 : i32
    scf.if %2 {
      %c0_22 = arith.constant 0 : index
      %c0_23 = arith.constant 0 : index
      %49 = vector.load %arg3[%c0_22, %c0_23] : memref<1x256xf32, #tpu.memory_space<vmem>>, vector<1x256xf32>
      %c0_24 = arith.constant 0 : index
      %c0_25 = arith.constant 0 : index
      %50 = vector.load %arg9[%c0_24, %c0_25] : memref<1x256xf32, #tpu.memory_space<vmem>>, vector<1x256xf32>
      tpu.vector_store %arg9[%c0_24, %c0_25], %49 {strides = array<i32>} : memref<1x256xf32, #tpu.memory_space<vmem>>, vector<1x256xf32>,
    } else {
    }
    %c0 = arith.constant 0 : index
    %c0_1 = arith.constant 0 : index
    %3 = vector.load %arg9[%c0, %c0_1] : memref<1x256xf32, #tpu.memory_space<vmem>>, vector<1x256xf32>
    %c0_2 = arith.constant 0 : index
    %c0_3 = arith.constant 0 : index
    %c0_4 = arith.constant 0 : index
    %4 = vector.load %arg2[%c0_2, %c0_3, %c0_4] : memref<1x1x256xbf16, #tpu.memory_space<vmem>>, vector<1x1x256xbf16>
    %5 = vector.shape_cast %4 : vector<1x1x256xbf16> to vector<1x256xbf16>
    %c0_5 = arith.constant 0 : index
    %c0_6 = arith.constant 0 : index
    %6 = vector.load %arg4[%c0_5, %c0_6] : memref<256x768xbf16, #tpu.memory_space<vmem>>, vector<256x768xbf16>
    %cst = arith.constant dense<0.000000e+00> : vector<1x768xf32>
    %7 = tpu.matmul %5, %6, %cst {dimension_numbers = #tpu.dot_dimension_numbers<[1], [0], [0], [1], [0, 0, 1, 1], [], []>} : vector<1x256xbf16>, vector<256x768xbf16>, vector<1x768xf32> -> vector<1x768xf32>
    %8 = arith.truncf %3 : vector<1x256xf32> to vector<1x256xbf16>
    %c0_7 = arith.constant 0 : index
    %c0_8 = arith.constant 0 : index
    %9 = vector.load %arg5[%c0_7, %c0_8] : memref<256x768xbf16, #tpu.memory_space<vmem>>, vector<256x768xbf16>
    %cst_9 = arith.constant dense<0.000000e+00> : vector<1x768xf32>
    %10 = tpu.matmul %8, %9, %cst_9 {dimension_numbers = #tpu.dot_dimension_numbers<[1], [0], [0], [1], [0, 0, 1, 1], [], []>} : vector<1x256xbf16>, vector<256x768xbf16>, vector<1x768xf32> -> vector<1x768xf32>
    %c0_10 = arith.constant 0 : index
    %c0_11 = arith.constant 0 : index
    %11 = vector.load %arg6[%c0_10, %c0_11] : memref<1x768xf32, #tpu.memory_space<vmem>>, vector<1x768xf32>
    %c0_12 = arith.constant 0 : index
    %c0_13 = arith.constant 0 : index
    %12 = vector.load %arg7[%c0_12, %c0_13] : memref<1x256xf32, #tpu.memory_space<vmem>>, vector<1x256xf32>
    %13 = vector.extract_strided_slice %7 {offsets = [0, 0], sizes = [1, 256], strides = [1, 1]} : vector<1x768xf32> to vector<1x256xf32>
    %14 = vector.extract_strided_slice %10 {offsets = [0, 0], sizes = [1, 256], strides = [1, 1]} : vector<1x768xf32> to vector<1x256xf32>
    %15 = arith.addf %13, %14 : vector<1x256xf32>
    %16 = vector.extract_strided_slice %11 {offsets = [0, 0], sizes = [1, 256], strides = [1, 1]} : vector<1x768xf32> to vector<1x256xf32>
    %17 = arith.addf %15, %16 : vector<1x256xf32>
    %18 = arith.negf %17 : vector<1x256xf32>
    %19 = math.exp %18 : vector<1x256xf32>
    %cst_14 = arith.constant 1.000000e+00 : f32
    %20 = vector.broadcast %cst_14 : f32 to vector<1x256xf32>
    %21 = arith.addf %20, %19 : vector<1x256xf32>
    %22 = arith.divf %20, %21 : vector<1x256xf32>
    %23 = vector.extract_strided_slice %7 {offsets = [0, 256], sizes = [1, 256], strides = [1, 1]} : vector<1x768xf32> to vector<1x256xf32>
    %24 = vector.extract_strided_slice %10 {offsets = [0, 256], sizes = [1, 256], strides = [1, 1]} : vector<1x768xf32> to vector<1x256xf32>
    %25 = arith.addf %23, %24 : vector<1x256xf32>
    %26 = vector.extract_strided_slice %11 {offsets = [0, 256], sizes = [1, 256], strides = [1, 1]} : vector<1x768xf32> to vector<1x256xf32>
    %27 = arith.addf %25, %26 : vector<1x256xf32>
    %28 = arith.negf %27 : vector<1x256xf32>
    %29 = math.exp %28 : vector<1x256xf32>
    %cst_15 = arith.constant 1.000000e+00 : f32
    %30 = vector.broadcast %cst_15 : f32 to vector<1x256xf32>
    %31 = arith.addf %30, %29 : vector<1x256xf32>
    %32 = arith.divf %30, %31 : vector<1x256xf32>
    %33 = vector.extract_strided_slice %7 {offsets = [0, 512], sizes = [1, 256], strides = [1, 1]} : vector<1x768xf32> to vector<1x256xf32>
    %34 = vector.extract_strided_slice %11 {offsets = [0, 512], sizes = [1, 256], strides = [1, 1]} : vector<1x768xf32> to vector<1x256xf32>
    %35 = arith.addf %33, %34 : vector<1x256xf32>
    %36 = vector.extract_strided_slice %10 {offsets = [0, 512], sizes = [1, 256], strides = [1, 1]} : vector<1x768xf32> to vector<1x256xf32>
    %37 = arith.addf %36, %12 : vector<1x256xf32>
    %38 = arith.mulf %22, %37 : vector<1x256xf32>
    %39 = arith.addf %35, %38 : vector<1x256xf32>
    %40 = math.tanh %39 : vector<1x256xf32>
    %cst_16 = arith.constant 1.000000e+00 : f32
    %41 = vector.broadcast %cst_16 : f32 to vector<1x256xf32>
    %42 = arith.subf %41, %32 : vector<1x256xf32>
    %43 = arith.mulf %42, %40 : vector<1x256xf32>
    %44 = arith.mulf %32, %3 : vector<1x256xf32>
    %45 = arith.addf %43, %44 : vector<1x256xf32>
    %c0_17 = arith.constant 0 : index
    %c0_18 = arith.constant 0 : index
    %46 = vector.load %arg9[%c0_17, %c0_18] : memref<1x256xf32, #tpu.memory_space<vmem>>, vector<1x256xf32>
    tpu.vector_store %arg9[%c0_17, %c0_18], %45 {strides = array<i32>} : memref<1x256xf32, #tpu.memory_space<vmem>>, vector<1x256xf32>,
    %47 = vector.shape_cast %45 : vector<1x256xf32> to vector<1x1x256xf32>
    %c0_19 = arith.constant 0 : index
    %c0_20 = arith.constant 0 : index
    %c0_21 = arith.constant 0 : index
    %48 = vector.load %arg8[%c0_19, %c0_20, %c0_21] : memref<1x1x256xf32, #tpu.memory_space<vmem>>, vector<1x1x256xf32>
    tpu.vector_store %arg8[%c0_19, %c0_20, %c0_21], %47 {strides = array<i32>} : memref<1x1x256xf32, #tpu.memory_space<vmem>>, vector<1x1x256xf32>,
    return
  }
  func.func @transform_0(%arg0: i32, %arg1: memref<8xi32, #tpu.memory_space<smem>>) -> (i32, i32, i32) {
    %0 = arith.index_cast %arg0 : i32 to index
    %1 = memref.load %arg1[%0] : memref<8xi32, #tpu.memory_space<smem>>
    %c0_i32 = arith.constant 0 : i32
    %c0_i32_0 = arith.constant 0 : i32
    %c0_i32_1 = arith.constant 0 : i32
    return %1, %c0_i32, %c0_i32_0 : i32, i32, i32
  }
  func.func @transform_1(%arg0: i32, %arg1: memref<8xi32, #tpu.memory_space<smem>>) -> (i32, i32) {
    %c0_i32 = arith.constant 0 : i32
    %c0_i32_0 = arith.constant 0 : i32
    %c0_i32_1 = arith.constant 0 : i32
    return %c0_i32, %c0_i32_0 : i32, i32
  }
  func.func @transform_2(%arg0: i32, %arg1: memref<8xi32, #tpu.memory_space<smem>>) -> (i32, i32) {
    %c0_i32 = arith.constant 0 : i32
    %c0_i32_0 = arith.constant 0 : i32
    %c0_i32_1 = arith.constant 0 : i32
    return %c0_i32, %c0_i32_0 : i32, i32
  }
  func.func @transform_3(%arg0: i32, %arg1: memref<8xi32, #tpu.memory_space<smem>>) -> (i32, i32) {
    %c0_i32 = arith.constant 0 : i32
    %c0_i32_0 = arith.constant 0 : i32
    %c0_i32_1 = arith.constant 0 : i32
    return %c0_i32, %c0_i32_0 : i32, i32
  }
  func.func @transform_4(%arg0: i32, %arg1: memref<8xi32, #tpu.memory_space<smem>>) -> (i32, i32) {
    %c0_i32 = arith.constant 0 : i32
    %c0_i32_0 = arith.constant 0 : i32
    %c0_i32_1 = arith.constant 0 : i32
    return %c0_i32, %c0_i32_0 : i32, i32
  }
  func.func @transform_5(%arg0: i32, %arg1: memref<8xi32, #tpu.memory_space<smem>>) -> (i32, i32) {
    %c0_i32 = arith.constant 0 : i32
    %c0_i32_0 = arith.constant 0 : i32
    %c0_i32_1 = arith.constant 0 : i32
    return %c0_i32, %c0_i32_0 : i32, i32
  }
  func.func @transform_6(%arg0: i32, %arg1: memref<8xi32, #tpu.memory_space<smem>>) -> (i32, i32, i32) {
    %c0_i32 = arith.constant 0 : i32
    %c0_i32_0 = arith.constant 0 : i32
    %c0_i32_1 = arith.constant 0 : i32
    return %arg0, %c0_i32, %c0_i32_0 : i32, i32, i32
  }
}

</mosaic_0001>

<llo_original>
// kernel: tpu_custom_call.1
$region0: #{tpu_custom_call.1}
  #allocation0 [shape = 'u32[]', space=smem, size = 0x4, offset = 0x4, fixed_abs, tag = 'smem constant byte address 0x4 - core index']
  #allocation1 [shape = 'u32[72,128]{1,0:T(1,128)}', space=vmem, size = 0x9000, scoped, tag = 'internal scratch']
  #allocation2 [shape = 'f32[1,256]{1,0:T(1,128)}', space=vmem, size = 0x400, scoped, tag = 'scratch operand']
  #allocation3 [shape = 's32[1]{0}', space=sflag, size = 0x4, scoped, tag = 'scoped memory for tpu_custom_call.1']
  #allocation4 [shape = 'u8[512]{0}', space=smem, size = 0x200, scoped, tag = 'prefetched SMEM operand 0']
  %s0 = inlined_call_operand.vmem [shape: s32[8], index: 0, kind: input, shape index: {}]
  %s1 = inlined_call_operand.vmem [shape: bf16[64,1,256], index: 1, kind: input, shape index: {}]
  %s2 = inlined_call_operand.vmem [shape: f32[1,256], index: 2, kind: input, shape index: {}]
  %s3 = inlined_call_operand.hbm [shape: bf16[256,768], index: 3, kind: input, shape index: {}]
  %s4 = inlined_call_operand.hbm [shape: bf16[256,768], index: 4, kind: input, shape index: {}]
  %s5 = inlined_call_operand.vmem [shape: f32[1,768], index: 5, kind: input, shape index: {}]
  %s6 = inlined_call_operand.vmem [shape: f32[1,256], index: 6, kind: input, shape index: {}]
  %s7 = inlined_call_operand.hbm [shape: f32[8,1,256], index: 7, kind: output, shape index: {}]
  %s8 = sld [smem:[#allocation0]]
  $region69: #{tpu_custom_call.1} parent=0
    _
  %s10 = ssub.s32 1, %s8
  %s11 = scalar_select 0, %s10, %s8
  %s13 = sshll.u32 %s0, 4
  %s14 = int_to_ptr.vmem [resolvable:$true] %s13
  %16 = dma.vmem_to_smem %s14, 16, [#allocation4], [#allocation3]
  %18 = dma.done [#allocation3], 16
  %19 = sfence
  $region1: #{tpu_custom_call.1} parent=0
    #allocation5 [shape = 'u8[393216]{0}', space=vmem, size = 0x60000, scoped, tag = 'input window, operand 3, single buffered']
    #allocation6 [shape = 's32[2]{0}', space=sflag, size = 0x8, scoped, tag = 'scoped memory for tpu_custom_call.1']
    #allocation7 [shape = 's32[2]{0}', space=sflag, size = 0x8, scoped, tag = 'scoped memory for tpu_custom_call.1']
    #allocation8 [shape = 'u8[393216]{0}', space=vmem, size = 0x60000, scoped, tag = 'input window, operand 4, single buffered']
    #allocation9 [shape = 's32[1]{0}', space=sflag, size = 0x4, scoped, tag = 'scoped memory for tpu_custom_call.1']
    #allocation10 [shape = 'u8[2048]{0}', space=vmem, size = 0x800, scoped, tag = 'output window, operand 0']
    %20 = vsyncpa [#allocation6], 0
    %21 = vsyncpa [#allocation9], 0
    %22 = vsyncpa [#allocation7], 0
    %s23 = scalar_lea.sflag [#allocation7], 1
    %24 = vsyncpa %s23, 0
    loop: start=0, step=1, limit=10
    $region2: #{tpu_custom_call.1} parent=1 // loop_pre_header
      _
    $region3: #{tpu_custom_call.1} parent=1 // loop_header
      %s26 = sphi 0, %s30
      %p27 = scmp.ge.s32.totalorder %s26, 10
      %s38 = sphi 0, %s40
      %s41 = sphi 0, %s38
      %s42 = sphi 0, %s41
      %s58 = sphi 0, %s42
      %s62 = sphi 0, %s62
      %s64 = sphi 0, %s62
      %s65 = sphi 0, %s64
      %s79 = sphi 0, %s65
      %s83 = sphi 0, %s83
      %s85 = sphi 0, %s83
      %s86 = sphi 0, %s85
      %s100 = sphi 0, %s86
      %s104 = sphi 0, %s104
      %s106 = sphi 0, %s104
      %s107 = sphi 0, %s106
      %s121 = sphi 0, %s107
      %s125 = sphi 0, %s125
      %s127 = sphi 0, %s125
      %s128 = sphi 0, %s127
      %s142 = sphi 0, %s128
      %s146 = sphi 0, %s146
      %s148 = sphi 0, %s146
      %s149 = sphi 0, %s148
      %s163 = sphi 0, %s149
      %s169 = sphi 0, %s171
      %s172 = sphi 0, %s169
      %s173 = sphi 0, %s172
      %s189 = sphi 0, %s173
    $region4: #{tpu_custom_call.1} parent=1 // loop_header_branch
      %29 = sbr.rel (%p27) target = $region8
    $region5: #{tpu_custom_call.1} parent=1 // loop_body
      %s31 = ssub.s32 %s26, 1
      %s32 = ssub.s32 %s26, 2
      %s33 = sadd.s32 %s26, 1
      %s34 = sld [smem:[#allocation4 + %s26]]
      %s35 = sld [smem:[#allocation4 + %s33]]
      %s36 = ssub.s32 %s34, %s35
      %p37 = scmp.eq.s32.totalorder %s36, 0
      %s39 = sadd.s32 %s38, 1
      %s40 = scalar_select %p37, %s38, %s39
      %p43 = pneg %p37
      %p44 = scmp.eq.s32.totalorder %s26, 7
      %p45 = por %p43, %p44
      %p46 = scmp.ne.s32.totalorder %s38, %s41
      %p47 = scmp.eq.s32.totalorder %s26, 0
      %p48 = por %p46, %p47
      %p49 = scmp.ne.s32.totalorder %s38, %s41
      %p50 = scmp.eq.s32.totalorder %s31, 7
      %p51 = por %p49, %p50
      %p52 = scmp.ne.s32.totalorder %s41, %s42
      %p53 = scmp.eq.s32.totalorder %s31, 0
      %p54 = por %p52, %p53
      %p55 = scmp.ne.s32.totalorder %s41, %s42
      %p56 = scmp.eq.s32.totalorder %s32, 7
      %p57 = por %p55, %p56
      %p59 = scmp.ne.s32.totalorder %s42, %s58
      %p60 = scmp.eq.s32.totalorder %s32, 0
      %p61 = por %p59, %p60
      %s63 = sadd.s32 %s62, 1
      %p66 = scmp.eq.s32.totalorder %s26, 7
      %p67 = scmp.ne.s32.totalorder %s62, %s64
      %p68 = scmp.eq.s32.totalorder %s26, 0
      %p69 = por %p67, %p68
      %p70 = scmp.ne.s32.totalorder %s62, %s64
      %p71 = scmp.eq.s32.totalorder %s31, 7
      %p72 = por %p70, %p71
      %p73 = scmp.ne.s32.totalorder %s64, %s65
      %p74 = scmp.eq.s32.totalorder %s31, 0
      %p75 = por %p73, %p74
      %p76 = scmp.ne.s32.totalorder %s64, %s65
      %p77 = scmp.eq.s32.totalorder %s32, 7
      %p78 = por %p76, %p77
      %p80 = scmp.ne.s32.totalorder %s65, %s79
      %p81 = scmp.eq.s32.totalorder %s32, 0
      %p82 = por %p80, %p81
      %s84 = sadd.s32 %s83, 1
      %p87 = scmp.eq.s32.totalorder %s26, 7
      %p88 = scmp.ne.s32.totalorder %s83, %s85
      %p89 = scmp.eq.s32.totalorder %s26, 0
      %p90 = por %p88, %p89
      %p91 = scmp.ne.s32.totalorder %s83, %s85
      %p92 = scmp.eq.s32.totalorder %s31, 7
      %p93 = por %p91, %p92
      %p94 = scmp.ne.s32.totalorder %s85, %s86
      %p95 = scmp.eq.s32.totalorder %s31, 0
      %p96 = por %p94, %p95
      %p97 = scmp.ne.s32.totalorder %s85, %s86
      %p98 = scmp.eq.s32.totalorder %s32, 7
      %p99 = por %p97, %p98
      %p101 = scmp.ne.s32.totalorder %s86, %s100
      %p102 = scmp.eq.s32.totalorder %s32, 0
      %p103 = por %p101, %p102
      %s105 = sadd.s32 %s104, 1
      %p108 = scmp.eq.s32.totalorder %s26, 7
      %p109 = scmp.ne.s32.totalorder %s104, %s106
      %p110 = scmp.eq.s32.totalorder %s26, 0
      %p111 = por %p109, %p110
      %p112 = scmp.ne.s32.totalorder %s104, %s106
      %p113 = scmp.eq.s32.totalorder %s31, 7
      %p114 = por %p112, %p113
      %p115 = scmp.ne.s32.totalorder %s106, %s107
      %p116 = scmp.eq.s32.totalorder %s31, 0
      %p117 = por %p115, %p116
      %p118 = scmp.ne.s32.totalorder %s106, %s107
      %p119 = scmp.eq.s32.totalorder %s32, 7
      %p120 = por %p118, %p119
      %p122 = scmp.ne.s32.totalorder %s107, %s121
      %p123 = scmp.eq.s32.totalorder %s32, 0
      %p124 = por %p122, %p123
      %s126 = sadd.s32 %s125, 1
      %p129 = scmp.eq.s32.totalorder %s26, 7
      %p130 = scmp.ne.s32.totalorder %s125, %s127
      %p131 = scmp.eq.s32.totalorder %s26, 0
      %p132 = por %p130, %p131
      %p133 = scmp.ne.s32.totalorder %s125, %s127
      %p134 = scmp.eq.s32.totalorder %s31, 7
      %p135 = por %p133, %p134
      %p136 = scmp.ne.s32.totalorder %s127, %s128
      %p137 = scmp.eq.s32.totalorder %s31, 0
      %p138 = por %p136, %p137
      %p139 = scmp.ne.s32.totalorder %s127, %s128
      %p140 = scmp.eq.s32.totalorder %s32, 7
      %p141 = por %p139, %p140
      %p143 = scmp.ne.s32.totalorder %s128, %s142
      %p144 = scmp.eq.s32.totalorder %s32, 0
      %p145 = por %p143, %p144
      %s147 = sadd.s32 %s146, 1
      %p150 = scmp.eq.s32.totalorder %s26, 7
      %p151 = scmp.ne.s32.totalorder %s146, %s148
      %p152 = scmp.eq.s32.totalorder %s26, 0
      %p153 = por %p151, %p152
      %p154 = scmp.ne.s32.totalorder %s146, %s148
      %p155 = scmp.eq.s32.totalorder %s31, 7
      %p156 = por %p154, %p155
      %p157 = scmp.ne.s32.totalorder %s148, %s149
      %p158 = scmp.eq.s32.totalorder %s31, 0
      %p159 = por %p157, %p158
      %p160 = scmp.ne.s32.totalorder %s148, %s149
      %p161 = scmp.eq.s32.totalorder %s32, 7
      %p162 = por %p160, %p161
      %p164 = scmp.ne.s32.totalorder %s149, %s163
      %p165 = scmp.eq.s32.totalorder %s32, 0
      %p166 = por %p164, %p165
      %s167 = ssub.s32 %s26, %s33
      %p168 = scmp.eq.s32.totalorder %s167, 0
      %s170 = sadd.s32 %s169, 1
      %s171 = scalar_select %p168, %s169, %s170
      %p174 = pneg %p168
      %p175 = scmp.eq.s32.totalorder %s26, 7
      %p176 = por %p174, %p175
      %p177 = scmp.ne.s32.totalorder %s169, %s172
      %p178 = scmp.eq.s32.totalorder %s26, 0
      %p179 = por %p177, %p178
      %p180 = scmp.ne.s32.totalorder %s169, %s172
      %p181 = scmp.eq.s32.totalorder %s31, 7
      %p182 = por %p180, %p181
      %p183 = scmp.ne.s32.totalorder %s172, %s173
      %p184 = scmp.eq.s32.totalorder %s31, 0
      %p185 = por %p183, %p184
      %p186 = scmp.ne.s32.totalorder %s172, %s173
      %p187 = scmp.eq.s32.totalorder %s32, 7
      %p188 = por %p186, %p187
      %p190 = scmp.ne.s32.totalorder %s173, %s189
      %p191 = scmp.eq.s32.totalorder %s32, 0
      %p192 = por %p190, %p191
      %p193 = scmp.le.s32.totalorder 1, %s26
      %p194 = scmp.lt.s32.totalorder %s26, 9
      %p195 = pnand %p193, %p194
      %p196 = pneg %p195
      // Predicated region
      $region9: #{tpu_custom_call.1} parent=5 // pred_check
        _
      $region10: #{tpu_custom_call.1} parent=5 // pred_check_branch
        %198 = sbr.rel (%p195) target = $region12
      $region11: #{tpu_custom_call.1} parent=5 // pred_region
        %s199 = ssub.s32 %s26, 1
        // Predicated region
        $region13: #{tpu_custom_call.1} parent=11 // pred_check
          %p200 = pneg %p75
        $region14: #{tpu_custom_call.1} parent=11 // pred_check_branch
          %202 = sbr.rel (%p200) target = $region16
        $region15: #{tpu_custom_call.1} parent=11 // pred_region
          _
        $region16: #{tpu_custom_call.1} parent=11 // pred_fallthru
          _
        // Predicated region
        $region17: #{tpu_custom_call.1} parent=11 // pred_check
          %p203 = pneg %p96
        $region18: #{tpu_custom_call.1} parent=11 // pred_check_branch
          %205 = sbr.rel (%p203) target = $region20
        $region19: #{tpu_custom_call.1} parent=11 // pred_region
          %207 = vsyncadd [#allocation6], 0
          %s208 = sshll.u32 %s3, 4
          %s209 = int_to_ptr.hbm [resolvable:$true] %s208
          %s210 = sshll.u32 [#allocation5], 4
          %s211 = int_to_ptr.vmem [resolvable:$true] %s210
          %216 = dma.hbm_to_vmem [thread:$0]  %s209, 12288, %s211, [#allocation6], 384, 384, 24
        $region20: #{tpu_custom_call.1} parent=11 // pred_fallthru
          _
        // Predicated region
        $region21: #{tpu_custom_call.1} parent=11 // pred_check
          %p217 = pneg %p117
        $region22: #{tpu_custom_call.1} parent=11 // pred_check_branch
          %219 = sbr.rel (%p217) target = $region24
        $region23: #{tpu_custom_call.1} parent=11 // pred_region
          %221 = vsyncadd [#allocation9], 0
          %s222 = sshll.u32 %s4, 4
          %s223 = int_to_ptr.hbm [resolvable:$true] %s222
          %s224 = sshll.u32 [#allocation8], 4
          %s225 = int_to_ptr.vmem [resolvable:$true] %s224
          %230 = dma.hbm_to_vmem [thread:$0]  %s223, 12288, %s225, [#allocation9], 384, 384, 24
        $region24: #{tpu_custom_call.1} parent=11 // pred_fallthru
          _
        // Predicated region
        $region25: #{tpu_custom_call.1} parent=11 // pred_check
          %p231 = pneg %p138
        $region26: #{tpu_custom_call.1} parent=11 // pred_check_branch
          %233 = sbr.rel (%p231) target = $region28
        $region27: #{tpu_custom_call.1} parent=11 // pred_region
          _
        $region28: #{tpu_custom_call.1} parent=11 // pred_fallthru
          _
        // Predicated region
        $region29: #{tpu_custom_call.1} parent=11 // pred_check
          %p234 = pneg %p159
        $region30: #{tpu_custom_call.1} parent=11 // pred_check_branch
          %236 = sbr.rel (%p234) target = $region32
        $region31: #{tpu_custom_call.1} parent=11 // pred_region
          _
        $region32: #{tpu_custom_call.1} parent=11 // pred_fallthru
          _
      $region12: #{tpu_custom_call.1} parent=5 // pred_fallthru
        _
      %p237 = scmp.lt.s32.totalorder %s26, 8
      // Predicated region
      $region33: #{tpu_custom_call.1} parent=5 // pred_check
        %p238 = pneg %p237
      $region34: #{tpu_custom_call.1} parent=5 // pred_check_branch
        %240 = sbr.rel (%p238) target = $region36
      $region35: #{tpu_custom_call.1} parent=5 // pred_region
        // Predicated region
        $region37: #{tpu_custom_call.1} parent=35 // pred_check
          %p241 = pneg %p48
        $region38: #{tpu_custom_call.1} parent=35 // pred_check_branch
          %243 = sbr.rel (%p241) target = $region40
        $region39: #{tpu_custom_call.1} parent=35 // pred_region
          %s244 = sld [smem:[#allocation4 + %s26]]
          %p245 = scmp.lt.s32.totalorder %s244, 63
          %s246 = scalar_select %p245, %s244, 63
          %s247 = smul.addr %s246, 2
          %s248 = scalar_lea.vmem %s1, %s247
          %s249 = sld [smem:[#allocation4 + %s26]]
        $region40: #{tpu_custom_call.1} parent=35 // pred_fallthru
          _
      $region36: #{tpu_custom_call.1} parent=5 // pred_fallthru
        _
      %p250 = scmp.le.s32.totalorder 1, %s26
      %p251 = scmp.lt.s32.totalorder %s26, 9
      %p252 = pnand %p250, %p251
      %p253 = pneg %p252
      // Predicated region
      $region41: #{tpu_custom_call.1} parent=5 // pred_check
        _
      $region42: #{tpu_custom_call.1} parent=5 // pred_check_branch
        %255 = sbr.rel (%p252) target = $region44
      $region43: #{tpu_custom_call.1} parent=5 // pred_region
        %s256 = ssub.s32 %s26, 1
        // Predicated region
        $region45: #{tpu_custom_call.1} parent=43 // pred_check
          %p257 = pneg %p96
        $region46: #{tpu_custom_call.1} parent=43 // pred_check_branch
          %259 = sbr.rel (%p257) target = $region48
        $region47: #{tpu_custom_call.1} parent=43 // pred_region
          %261 = dma.done [#allocation6], 12288
        $region48: #{tpu_custom_call.1} parent=43 // pred_fallthru
          _
        // Predicated region
        $region49: #{tpu_custom_call.1} parent=43 // pred_check
          %p262 = pneg %p117
        $region50: #{tpu_custom_call.1} parent=43 // pred_check_branch
          %264 = sbr.rel (%p262) target = $region52
        $region51: #{tpu_custom_call.1} parent=43 // pred_region
          %266 = dma.done [#allocation9], 12288
        $region52: #{tpu_custom_call.1} parent=43 // pred_fallthru
          _
        %s267 = sld [smem:[#allocation4 + %s31]]
        %p268 = scmp.lt.s32.totalorder %s267, 63
        %s269 = scalar_select %p268, %s267, 63
        %s270 = smul.addr %s269, 2
        %s271 = scalar_lea.vmem %s1, %s270
        %p272 = pneg %p54
        %p273 = pneg %p51
        %p274 = pneg %p75
        %p275 = pneg %p72
        %p276 = pneg %p96
        %p277 = pneg %p93
        %p278 = pneg %p117
        %p279 = pneg %p114
        %p280 = pneg %p138
        %p281 = pneg %p135
        %p282 = pneg %p159
        %p283 = pneg %p156
        %p284 = pneg %p185
        %p285 = pneg %p182
        %s286 = sand.u32 %s172, 1
        %s287 = scalar_lea.sflag [#allocation7], %s286
        %s288 = sand.u32 %s172, 1
        %s289 = smul.addr %s288, 2
        %s290 = scalar_lea.vmem [#allocation10], %s289
        %s291 = sld [smem:[#allocation4 + %s31]]
        %p292 = scmp.lt.s32.totalorder %s291, 63
        %s293 = scalar_select %p292, %s291, 63
        %s294 = smul.addr %s293, 2
        %s295 = scalar_lea.vmem %s1, %s294
        %s296 = sld [smem:[#allocation4 + %s31]]
        %p297 = scmp.eq.s32.totalorder %s31, 0
        // Predicated region
        $region53: #{tpu_custom_call.1} parent=43 // pred_check
          %p298 = pneg %p297
        $region54: #{tpu_custom_call.1} parent=43 // pred_check_branch
          %300 = sbr.rel (%p298) target = $region56
        $region55: #{tpu_custom_call.1} parent=43 // pred_region
          %v301 = vld [vmem:[%s2] sm:$0x3]
          %v302 = vlaneseq
          %vm303 = vcmp.ge.s32.totalorder %v302, 0
          %vm304 = vcmp.lt.s32.totalorder %v302, 256
          %vm305 = vmand %vm303, %vm304
          %306 = vst.msk [vmem:[#allocation2] sm:$0x3] %vm305, %v301
        $region56: #{tpu_custom_call.1} parent=43 // pred_fallthru
          _
        %v307 = vld [vmem:[#allocation2] sm:$0x3]
        %v308 = vld [vmem:[%s295] sm:$0x3]
        %v309 = vld [vmem:[#allocation5] sm:$0xff]
        %v310 = vld [vmem:[#allocation5 + $0x8] sm:$0xff]
        %v311 = vld [vmem:[#allocation5 + $0x10] sm:$0xff]
        %v312 = vld [vmem:[#allocation5 + $0x18] sm:$0xff]
        %v313 = vld [vmem:[#allocation5 + $0x20] sm:$0xff]
        %v314 = vld [vmem:[#allocation5 + $0x28] sm:$0xff]
        %v315 = vld [vmem:[#allocation5 + $0x30] sm:$0xff]
        %v316 = vld [vmem:[#allocation5 + $0x38] sm:$0xff]
        %v317 = vld [vmem:[#allocation5 + $0x40] sm:$0xff]
        %v318 = vld [vmem:[#allocation5 + $0x48] sm:$0xff]
        %v319 = vld [vmem:[#allocation5 + $0x50] sm:$0xff]
        %v320 = vld [vmem:[#allocation5 + $0x58] sm:$0xff]
        %v321 = vld [vmem:[#allocation5 + $0x60] sm:$0xff]
        %v322 = vld [vmem:[#allocation5 + $0x68] sm:$0xff]
        %v323 = vld [vmem:[#allocation5 + $0x70] sm:$0xff]
        %v324 = vld [vmem:[#allocation5 + $0x78] sm:$0xff]
        %v325 = vld [vmem:[#allocation5 + $0x80] sm:$0xff]
        %v326 = vld [vmem:[#allocation5 + $0x88] sm:$0xff]
        %v327 = vld [vmem:[#allocation5 + $0x90] sm:$0xff]
        %v328 = vld [vmem:[#allocation5 + $0x98] sm:$0xff]
        %v329 = vld [vmem:[#allocation5 + $0xa0] sm:$0xff]
        %v330 = vld [vmem:[#allocation5 + $0xa8] sm:$0xff]
        %v331 = vld [vmem:[#allocation5 + $0xb0] sm:$0xff]
        %v332 = vld [vmem:[#allocation5 + $0xb8] sm:$0xff]
        %v333 = vld [vmem:[#allocation5 + $0xc0] sm:$0xff]
        %v334 = vld [vmem:[#allocation5 + $0xc8] sm:$0xff]
        %v335 = vld [vmem:[#allocation5 + $0xd0] sm:$0xff]
        %v336 = vld [vmem:[#allocation5 + $0xd8] sm:$0xff]
        %v337 = vld [vmem:[#allocation5 + $0xe0] sm:$0xff]
        %v338 = vld [vmem:[#allocation5 + $0xe8] sm:$0xff]
        %v339 = vld [vmem:[#allocation5 + $0xf0] sm:$0xff]
        %v340 = vld [vmem:[#allocation5 + $0xf8] sm:$0xff]
        %v341 = vld [vmem:[#allocation5 + $0x100] sm:$0xff]
        %v342 = vld [vmem:[#allocation5 + $0x108] sm:$0xff]
        %v343 = vld [vmem:[#allocation5 + $0x110] sm:$0xff]
        %v344 = vld [vmem:[#allocation5 + $0x118] sm:$0xff]
        %v345 = vld [vmem:[#allocation5 + $0x120] sm:$0xff]
        %v346 = vld [vmem:[#allocation5 + $0x128] sm:$0xff]
        %v347 = vld [vmem:[#allocation5 + $0x130] sm:$0xff]
        %v348 = vld [vmem:[#allocation5 + $0x138] sm:$0xff]
        %v349 = vld [vmem:[#allocation5 + $0x140] sm:$0xff]
        %v350 = vld [vmem:[#allocation5 + $0x148] sm:$0xff]
        %v351 = vld [vmem:[#allocation5 + $0x150] sm:$0xff]
        %v352 = vld [vmem:[#allocation5 + $0x158] sm:$0xff]
        %v353 = vld [vmem:[#allocation5 + $0x160] sm:$0xff]
        %v354 = vld [vmem:[#allocation5 + $0x168] sm:$0xff]
        %v355 = vld [vmem:[#allocation5 + $0x170] sm:$0xff]
        %v356 = vld [vmem:[#allocation5 + $0x178] sm:$0xff]
        %v357 = vld [vmem:[#allocation5 + $0x180] sm:$0xff]
        %v358 = vld [vmem:[#allocation5 + $0x188] sm:$0xff]
        %v359 = vld [vmem:[#allocation5 + $0x190] sm:$0xff]
        %v360 = vld [vmem:[#allocation5 + $0x198] sm:$0xff]
        %v361 = vld [vmem:[#allocation5 + $0x1a0] sm:$0xff]
        %v362 = vld [vmem:[#allocation5 + $0x1a8] sm:$0xff]
        %v363 = vld [vmem:[#allocation5 + $0x1b0] sm:$0xff]
        %v364 = vld [vmem:[#allocation5 + $0x1b8] sm:$0xff]
        %v365 = vld [vmem:[#allocation5 + $0x1c0] sm:$0xff]
        %v366 = vld [vmem:[#allocation5 + $0x1c8] sm:$0xff]
        %v367 = vld [vmem:[#allocation5 + $0x1d0] sm:$0xff]
        %v368 = vld [vmem:[#allocation5 + $0x1d8] sm:$0xff]
        %v369 = vld [vmem:[#allocation5 + $0x1e0] sm:$0xff]
        %v370 = vld [vmem:[#allocation5 + $0x1e8] sm:$0xff]
        %v371 = vld [vmem:[#allocation5 + $0x1f0] sm:$0xff]
        %v372 = vld [vmem:[#allocation5 + $0x1f8] sm:$0xff]
        %v373 = vld [vmem:[#allocation5 + $0x200] sm:$0xff]
        %v374 = vld [vmem:[#allocation5 + $0x208] sm:$0xff]
        %v375 = vld [vmem:[#allocation5 + $0x210] sm:$0xff]
        %v376 = vld [vmem:[#allocation5 + $0x218] sm:$0xff]
        %v377 = vld [vmem:[#allocation5 + $0x220] sm:$0xff]
        %v378 = vld [vmem:[#allocation5 + $0x228] sm:$0xff]
        %v379 = vld [vmem:[#allocation5 + $0x230] sm:$0xff]
        %v380 = vld [vmem:[#allocation5 + $0x238] sm:$0xff]
        %v381 = vld [vmem:[#allocation5 + $0x240] sm:$0xff]
        %v382 = vld [vmem:[#allocation5 + $0x248] sm:$0xff]
        %v383 = vld [vmem:[#allocation5 + $0x250] sm:$0xff]
        %v384 = vld [vmem:[#allocation5 + $0x258] sm:$0xff]
        %v385 = vld [vmem:[#allocation5 + $0x260] sm:$0xff]
        %v386 = vld [vmem:[#allocation5 + $0x268] sm:$0xff]
        %v387 = vld [vmem:[#allocation5 + $0x270] sm:$0xff]
        %v388 = vld [vmem:[#allocation5 + $0x278] sm:$0xff]
        %v389 = vld [vmem:[#allocation5 + $0x280] sm:$0xff]
        %v390 = vld [vmem:[#allocation5 + $0x288] sm:$0xff]
        %v391 = vld [vmem:[#allocation5 + $0x290] sm:$0xff]
        %v392 = vld [vmem:[#allocation5 + $0x298] sm:$0xff]
        %v393 = vld [vmem:[#allocation5 + $0x2a0] sm:$0xff]
        %v394 = vld [vmem:[#allocation5 + $0x2a8] sm:$0xff]
        %v395 = vld [vmem:[#allocation5 + $0x2b0] sm:$0xff]
        %v396 = vld [vmem:[#allocation5 + $0x2b8] sm:$0xff]
        %v397 = vld [vmem:[#allocation5 + $0x2c0] sm:$0xff]
        %v398 = vld [vmem:[#allocation5 + $0x2c8] sm:$0xff]
        %v399 = vld [vmem:[#allocation5 + $0x2d0] sm:$0xff]
        %v400 = vld [vmem:[#allocation5 + $0x2d8] sm:$0xff]
        %v401 = vld [vmem:[#allocation5 + $0x2e0] sm:$0xff]
        %v402 = vld [vmem:[#allocation5 + $0x2e8] sm:$0xff]
        %v403 = vld [vmem:[#allocation5 + $0x2f0] sm:$0xff]
        %v404 = vld [vmem:[#allocation5 + $0x2f8] sm:$0xff]
        %406 = vst [vmem:[#allocation1] ss:$9 sm:$0xff] %v308
        %v407 = vld [vmem:[#allocation1] sm:$0xff]
        %v408 = vld [vmem:[#allocation1 + $0x9] sm:$0xff]
        %v507 = vunpack.c.l.b16 %v309
        %v508 = vunpack.c.h.b16 %v309
        %v509 = vunpack.c.l.b16 %v310
        %v510 = vunpack.c.h.b16 %v310
        %v511 = vunpack.c.l.b16 %v311
        %v512 = vunpack.c.h.b16 %v311
        %v513 = vunpack.c.l.b16 %v312
        %v514 = vunpack.c.h.b16 %v312
        %v515 = vunpack.c.l.b16 %v313
        %v516 = vunpack.c.h.b16 %v313
        %v517 = vunpack.c.l.b16 %v314
        %v518 = vunpack.c.h.b16 %v314
        %v519 = vunpack.c.l.b16 %v315
        %v520 = vunpack.c.h.b16 %v315
        %v521 = vunpack.c.l.b16 %v316
        %v522 = vunpack.c.h.b16 %v316
        %v523 = vunpack.c.l.b16 %v317
        %v524 = vunpack.c.h.b16 %v317
        %v525 = vunpack.c.l.b16 %v318
        %v526 = vunpack.c.h.b16 %v318
        %v527 = vunpack.c.l.b16 %v319
        %v528 = vunpack.c.h.b16 %v319
        %v529 = vunpack.c.l.b16 %v320
        %v530 = vunpack.c.h.b16 %v320
        %v531 = vunpack.c.l.b16 %v321
        %v532 = vunpack.c.h.b16 %v321
        %v533 = vunpack.c.l.b16 %v322
        %v534 = vunpack.c.h.b16 %v322
        %v535 = vunpack.c.l.b16 %v323
        %v536 = vunpack.c.h.b16 %v323
        %v537 = vunpack.c.l.b16 %v324
        %v538 = vunpack.c.h.b16 %v324
        %v539 = vunpack.c.l.b16 %v325
        %v540 = vunpack.c.h.b16 %v325
        %v541 = vunpack.c.l.b16 %v326
        %v542 = vunpack.c.h.b16 %v326
        %v543 = vunpack.c.l.b16 %v327
        %v544 = vunpack.c.h.b16 %v327
        %v545 = vunpack.c.l.b16 %v328
        %v546 = vunpack.c.h.b16 %v328
        %v547 = vunpack.c.l.b16 %v329
        %v548 = vunpack.c.h.b16 %v329
        %v549 = vunpack.c.l.b16 %v330
        %v550 = vunpack.c.h.b16 %v330
        %v551 = vunpack.c.l.b16 %v331
        %v552 = vunpack.c.h.b16 %v331
        %v553 = vunpack.c.l.b16 %v332
        %v554 = vunpack.c.h.b16 %v332
        %v555 = vunpack.c.l.b16 %v333
        %v556 = vunpack.c.h.b16 %v333
        %v557 = vunpack.c.l.b16 %v334
        %v558 = vunpack.c.h.b16 %v334
        %v559 = vunpack.c.l.b16 %v335
        %v560 = vunpack.c.h.b16 %v335
        %v561 = vunpack.c.l.b16 %v336
        %v562 = vunpack.c.h.b16 %v336
        %v563 = vunpack.c.l.b16 %v337
        %v564 = vunpack.c.h.b16 %v337
        %v565 = vunpack.c.l.b16 %v338
        %v566 = vunpack.c.h.b16 %v338
        %v567 = vunpack.c.l.b16 %v339
        %v568 = vunpack.c.h.b16 %v339
        %v569 = vunpack.c.l.b16 %v340
        %v570 = vunpack.c.h.b16 %v340
        %v571 = vunpack.c.l.b16 %v341
        %v572 = vunpack.c.h.b16 %v341
        %v573 = vunpack.c.l.b16 %v342
        %v574 = vunpack.c.h.b16 %v342
        %v575 = vunpack.c.l.b16 %v343
        %v576 = vunpack.c.h.b16 %v343
        %v577 = vunpack.c.l.b16 %v344
        %v578 = vunpack.c.h.b16 %v344
        %v579 = vunpack.c.l.b16 %v345
        %v580 = vunpack.c.h.b16 %v345
        %v581 = vunpack.c.l.b16 %v346
        %v582 = vunpack.c.h.b16 %v346
        %v583 = vunpack.c.l.b16 %v347
        %v584 = vunpack.c.h.b16 %v347
        %v585 = vunpack.c.l.b16 %v348
        %v586 = vunpack.c.h.b16 %v348
        %v587 = vunpack.c.l.b16 %v349
        %v588 = vunpack.c.h.b16 %v349
        %v589 = vunpack.c.l.b16 %v350
        %v590 = vunpack.c.h.b16 %v350
        %v591 = vunpack.c.l.b16 %v351
        %v592 = vunpack.c.h.b16 %v351
        %v593 = vunpack.c.l.b16 %v352
        %v594 = vunpack.c.h.b16 %v352
        %v595 = vunpack.c.l.b16 %v353
        %v596 = vunpack.c.h.b16 %v353
        %v597 = vunpack.c.l.b16 %v354
        %v598 = vunpack.c.h.b16 %v354
        %v599 = vunpack.c.l.b16 %v355
        %v600 = vunpack.c.h.b16 %v355
        %v601 = vunpack.c.l.b16 %v356
        %v602 = vunpack.c.h.b16 %v356
        %v603 = vunpack.c.l.b16 %v357
        %v604 = vunpack.c.h.b16 %v357
        %v605 = vunpack.c.l.b16 %v358
        %v606 = vunpack.c.h.b16 %v358
        %v607 = vunpack.c.l.b16 %v359
        %v608 = vunpack.c.h.b16 %v359
        %v609 = vunpack.c.l.b16 %v360
        %v610 = vunpack.c.h.b16 %v360
        %v611 = vunpack.c.l.b16 %v361
        %v612 = vunpack.c.h.b16 %v361
        %v613 = vunpack.c.l.b16 %v362
        %v614 = vunpack.c.h.b16 %v362
        %v615 = vunpack.c.l.b16 %v363
        %v616 = vunpack.c.h.b16 %v363
        %v617 = vunpack.c.l.b16 %v364
        %v618 = vunpack.c.h.b16 %v364
        %v619 = vunpack.c.l.b16 %v365
        %v620 = vunpack.c.h.b16 %v365
        %v621 = vunpack.c.l.b16 %v366
        %v622 = vunpack.c.h.b16 %v366
        %v623 = vunpack.c.l.b16 %v367
        %v624 = vunpack.c.h.b16 %v367
        %v625 = vunpack.c.l.b16 %v368
        %v626 = vunpack.c.h.b16 %v368
        %v627 = vunpack.c.l.b16 %v369
        %v628 = vunpack.c.h.b16 %v369
        %v629 = vunpack.c.l.b16 %v370
        %v630 = vunpack.c.h.b16 %v370
        %v631 = vunpack.c.l.b16 %v371
        %v632 = vunpack.c.h.b16 %v371
        %v633 = vunpack.c.l.b16 %v372
        %v634 = vunpack.c.h.b16 %v372
        %v635 = vunpack.c.l.b16 %v373
        %v636 = vunpack.c.h.b16 %v373
        %v637 = vunpack.c.l.b16 %v374
        %v638 = vunpack.c.h.b16 %v374
        %v639 = vunpack.c.l.b16 %v375
        %v640 = vunpack.c.h.b16 %v375
        %v641 = vunpack.c.l.b16 %v376
        %v642 = vunpack.c.h.b16 %v376
        %v643 = vunpack.c.l.b16 %v377
        %v644 = vunpack.c.h.b16 %v377
        %v645 = vunpack.c.l.b16 %v378
        %v646 = vunpack.c.h.b16 %v378
        %v647 = vunpack.c.l.b16 %v379
        %v648 = vunpack.c.h.b16 %v379
        %v649 = vunpack.c.l.b16 %v380
        %v650 = vunpack.c.h.b16 %v380
        %v651 = vunpack.c.l.b16 %v381
        %v652 = vunpack.c.h.b16 %v381
        %v653 = vunpack.c.l.b16 %v382
        %v654 = vunpack.c.h.b16 %v382
        %v655 = vunpack.c.l.b16 %v383
        %v656 = vunpack.c.h.b16 %v383
        %v657 = vunpack.c.l.b16 %v384
        %v658 = vunpack.c.h.b16 %v384
        %v659 = vunpack.c.l.b16 %v385
        %v660 = vunpack.c.h.b16 %v385
        %v661 = vunpack.c.l.b16 %v386
        %v662 = vunpack.c.h.b16 %v386
        %v663 = vunpack.c.l.b16 %v387
        %v664 = vunpack.c.h.b16 %v387
        %v665 = vunpack.c.l.b16 %v388
        %v666 = vunpack.c.h.b16 %v388
        %v667 = vunpack.c.l.b16 %v389
        %v668 = vunpack.c.h.b16 %v389
        %v669 = vunpack.c.l.b16 %v390
        %v670 = vunpack.c.h.b16 %v390
        %v671 = vunpack.c.l.b16 %v391
        %v672 = vunpack.c.h.b16 %v391
        %v673 = vunpack.c.l.b16 %v392
        %v674 = vunpack.c.h.b16 %v392
        %v675 = vunpack.c.l.b16 %v393
        %v676 = vunpack.c.h.b16 %v393
        %v677 = vunpack.c.l.b16 %v394
        %v678 = vunpack.c.h.b16 %v394
        %v679 = vunpack.c.l.b16 %v395
        %v680 = vunpack.c.h.b16 %v395
        %v681 = vunpack.c.l.b16 %v396
        %v682 = vunpack.c.h.b16 %v396
        %v683 = vunpack.c.l.b16 %v397
        %v684 = vunpack.c.h.b16 %v397
        %v685 = vunpack.c.l.b16 %v398
        %v686 = vunpack.c.h.b16 %v398
        %v687 = vunpack.c.l.b16 %v399
        %v688 = vunpack.c.h.b16 %v399
        %v689 = vunpack.c.l.b16 %v400
        %v690 = vunpack.c.h.b16 %v400
        %v691 = vunpack.c.l.b16 %v401
        %v692 = vunpack.c.h.b16 %v401
        %v693 = vunpack.c.l.b16 %v402
        %v694 = vunpack.c.h.b16 %v402
        %v695 = vunpack.c.l.b16 %v403
        %v696 = vunpack.c.h.b16 %v403
        %v697 = vunpack.c.l.b16 %v404
        %v698 = vunpack.c.h.b16 %v404
        %v699 = vpack.c.b16 %v513, %v507
        %v700 = vpack.c.b16 %v514, %v508
        %v701 = vpack.c.b16 %v515, %v509
        %v702 = vpack.c.b16 %v516, %v510
        %v703 = vpack.c.b16 %v517, %v511
        %v704 = vpack.c.b16 %v518, %v512
        %v705 = vpack.c.b16 %v525, %v519
        %v706 = vpack.c.b16 %v526, %v520
        %v707 = vpack.c.b16 %v527, %v521
        %v708 = vpack.c.b16 %v528, %v522
        %v709 = vpack.c.b16 %v529, %v523
        %v710 = vpack.c.b16 %v530, %v524
        %v711 = vpack.c.b16 %v537, %v531
        %v712 = vpack.c.b16 %v538, %v532
        %v713 = vpack.c.b16 %v539, %v533
        %v714 = vpack.c.b16 %v540, %v534
        %v715 = vpack.c.b16 %v541, %v535
        %v716 = vpack.c.b16 %v542, %v536
        %v717 = vpack.c.b16 %v549, %v543
        %v718 = vpack.c.b16 %v550, %v544
        %v719 = vpack.c.b16 %v551, %v545
        %v720 = vpack.c.b16 %v552, %v546
        %v721 = vpack.c.b16 %v553, %v547
        %v722 = vpack.c.b16 %v554, %v548
        %v723 = vpack.c.b16 %v561, %v555
        %v724 = vpack.c.b16 %v562, %v556
        %v725 = vpack.c.b16 %v563, %v557
        %v726 = vpack.c.b16 %v564, %v558
        %v727 = vpack.c.b16 %v565, %v559
        %v728 = vpack.c.b16 %v566, %v560
        %v729 = vpack.c.b16 %v573, %v567
        %v730 = vpack.c.b16 %v574, %v568
        %v731 = vpack.c.b16 %v575, %v569
        %v732 = vpack.c.b16 %v576, %v570
        %v733 = vpack.c.b16 %v577, %v571
        %v734 = vpack.c.b16 %v578, %v572
        %v735 = vpack.c.b16 %v585, %v579
        %v736 = vpack.c.b16 %v586, %v580
        %v737 = vpack.c.b16 %v587, %v581
        %v738 = vpack.c.b16 %v588, %v582
        %v739 = vpack.c.b16 %v589, %v583
        %v740 = vpack.c.b16 %v590, %v584
        %v741 = vpack.c.b16 %v597, %v591
        %v742 = vpack.c.b16 %v598, %v592
        %v743 = vpack.c.b16 %v599, %v593
        %v744 = vpack.c.b16 %v600, %v594
        %v745 = vpack.c.b16 %v601, %v595
        %v746 = vpack.c.b16 %v602, %v596
        %v747 = vpack.c.b16 %v609, %v603
        %v748 = vpack.c.b16 %v610, %v604
        %v749 = vpack.c.b16 %v611, %v605
        %v750 = vpack.c.b16 %v612, %v606
        %v751 = vpack.c.b16 %v613, %v607
        %v752 = vpack.c.b16 %v614, %v608
        %v753 = vpack.c.b16 %v621, %v615
        %v754 = vpack.c.b16 %v622, %v616
        %v755 = vpack.c.b16 %v623, %v617
        %v756 = vpack.c.b16 %v624, %v618
        %v757 = vpack.c.b16 %v625, %v619
        %v758 = vpack.c.b16 %v626, %v620
        %v759 = vpack.c.b16 %v633, %v627
        %v760 = vpack.c.b16 %v634, %v628
        %v761 = vpack.c.b16 %v635, %v629
        %v762 = vpack.c.b16 %v636, %v630
        %v763 = vpack.c.b16 %v637, %v631
        %v764 = vpack.c.b16 %v638, %v632
        %v765 = vpack.c.b16 %v645, %v639
        %v766 = vpack.c.b16 %v646, %v640
        %v767 = vpack.c.b16 %v647, %v641
        %v768 = vpack.c.b16 %v648, %v642
        %v769 = vpack.c.b16 %v649, %v643
        %v770 = vpack.c.b16 %v650, %v644
        %v771 = vpack.c.b16 %v657, %v651
        %v772 = vpack.c.b16 %v658, %v652
        %v773 = vpack.c.b16 %v659, %v653
        %v774 = vpack.c.b16 %v660, %v654
        %v775 = vpack.c.b16 %v661, %v655
        %v776 = vpack.c.b16 %v662, %v656
        %v777 = vpack.c.b16 %v669, %v663
        %v778 = vpack.c.b16 %v670, %v664
        %v779 = vpack.c.b16 %v671, %v665
        %v780 = vpack.c.b16 %v672, %v666
        %v781 = vpack.c.b16 %v673, %v667
        %v782 = vpack.c.b16 %v674, %v668
        %v783 = vpack.c.b16 %v681, %v675
        %v784 = vpack.c.b16 %v682, %v676
        %v785 = vpack.c.b16 %v683, %v677
        %v786 = vpack.c.b16 %v684, %v678
        %v787 = vpack.c.b16 %v685, %v679
        %v788 = vpack.c.b16 %v686, %v680
        %v789 = vpack.c.b16 %v693, %v687
        %v790 = vpack.c.b16 %v694, %v688
        %v791 = vpack.c.b16 %v695, %v689
        %v792 = vpack.c.b16 %v696, %v690
        %v793 = vpack.c.b16 %v697, %v691
        %v794 = vpack.c.b16 %v698, %v692
        %891 = vmatpush.bf16.msra.mxu0 %v741
        %892 = vmatpush.bf16.msra.mxu0 %v735
        %893 = vmatpush.bf16.msra.mxu0 %v729
        %894 = vmatpush.bf16.msra.mxu0 %v723
        %895 = vmatpush.bf16.msra.mxu0 %v717
        %896 = vmatpush.bf16.msra.mxu0 %v711
        %897 = vmatpush.bf16.msra.mxu0 %v705
        %898 = vmatpush.bf16.msra.mxu0 %v699
        %899 = vmatmul.bf16.gmra.mxu0 %v407
        %v900 = vpop.f32.mrf.mxu0
        %v901 = vadd.f32 0.0, %v900
        %v902 = vpop.f32.mrf.mxu0
        %903 = vdwg.mxu0
        %904 = vmatpush.bf16.msra.mxu0 %v789
        %905 = vmatpush.bf16.msra.mxu0 %v783
        %906 = vmatpush.bf16.msra.mxu0 %v777
        %907 = vmatpush.bf16.msra.mxu0 %v771
        %908 = vmatpush.bf16.msra.mxu0 %v765
        %909 = vmatpush.bf16.msra.mxu0 %v759
        %910 = vmatpush.bf16.msra.mxu0 %v753
        %911 = vmatpush.bf16.msra.mxu0 %v747
        %912 = vmatmul.bf16.gmra.mxu0 %v408
        %v913 = vpop.f32.mrf.mxu0
        %v914 = vadd.f32 %v901, %v913
        %v915 = vpop.f32.mrf.mxu0
        %916 = vdwg.mxu0
        %917 = vmatpush.bf16.msra.mxu0 %v742
        %918 = vmatpush.bf16.msra.mxu0 %v736
        %919 = vmatpush.bf16.msra.mxu0 %v730
        %920 = vmatpush.bf16.msra.mxu0 %v724
        %921 = vmatpush.bf16.msra.mxu0 %v718
        %922 = vmatpush.bf16.msra.mxu0 %v712
        %923 = vmatpush.bf16.msra.mxu0 %v706
        %924 = vmatpush.bf16.msra.mxu0 %v700
        %925 = vmatmul.bf16.gmra.mxu0 %v407
        %v926 = vpop.f32.mrf.mxu0
        %v927 = vadd.f32 0.0, %v926
        %v928 = vpop.f32.mrf.mxu0
        %929 = vdwg.mxu0
        %930 = vmatpush.bf16.msra.mxu0 %v790
        %931 = vmatpush.bf16.msra.mxu0 %v784
        %932 = vmatpush.bf16.msra.mxu0 %v778
        %933 = vmatpush.bf16.msra.mxu0 %v772
        %934 = vmatpush.bf16.msra.mxu0 %v766
        %935 = vmatpush.bf16.msra.mxu0 %v760
        %936 = vmatpush.bf16.msra.mxu0 %v754
        %937 = vmatpush.bf16.msra.mxu0 %v748
        %938 = vmatmul.bf16.gmra.mxu0 %v408
        %v939 = vpop.f32.mrf.mxu0
        %v940 = vadd.f32 %v927, %v939
        %v941 = vpop.f32.mrf.mxu0
        %942 = vdwg.mxu0
        %943 = vmatpush.bf16.msra.mxu0 %v743
        %944 = vmatpush.bf16.msra.mxu0 %v737
        %945 = vmatpush.bf16.msra.mxu0 %v731
        %946 = vmatpush.bf16.msra.mxu0 %v725
        %947 = vmatpush.bf16.msra.mxu0 %v719
        %948 = vmatpush.bf16.msra.mxu0 %v713
        %949 = vmatpush.bf16.msra.mxu0 %v707
        %950 = vmatpush.bf16.msra.mxu0 %v701
        %951 = vmatmul.bf16.gmra.mxu0 %v407
        %v952 = vpop.f32.mrf.mxu0
        %v953 = vadd.f32 0.0, %v952
        %v954 = vpop.f32.mrf.mxu0
        %955 = vdwg.mxu0
        %956 = vmatpush.bf16.msra.mxu0 %v791
        %957 = vmatpush.bf16.msra.mxu0 %v785
        %958 = vmatpush.bf16.msra.mxu0 %v779
        %959 = vmatpush.bf16.msra.mxu0 %v773
        %960 = vmatpush.bf16.msra.mxu0 %v767
        %961 = vmatpush.bf16.msra.mxu0 %v761
        %962 = vmatpush.bf16.msra.mxu0 %v755
        %963 = vmatpush.bf16.msra.mxu0 %v749
        %964 = vmatmul.bf16.gmra.mxu0 %v408
        %v965 = vpop.f32.mrf.mxu0
        %v966 = vadd.f32 %v953, %v965
        %v967 = vpop.f32.mrf.mxu0
        %968 = vdwg.mxu0
        %969 = vmatpush.bf16.msra.mxu0 %v744
        %970 = vmatpush.bf16.msra.mxu0 %v738
        %971 = vmatpush.bf16.msra.mxu0 %v732
        %972 = vmatpush.bf16.msra.mxu0 %v726
        %973 = vmatpush.bf16.msra.mxu0 %v720
        %974 = vmatpush.bf16.msra.mxu0 %v714
        %975 = vmatpush.bf16.msra.mxu0 %v708
        %976 = vmatpush.bf16.msra.mxu0 %v702
        %977 = vmatmul.bf16.gmra.mxu0 %v407
        %v978 = vpop.f32.mrf.mxu0
        %v979 = vadd.f32 0.0, %v978
        %v980 = vpop.f32.mrf.mxu0
        %981 = vdwg.mxu0
        %982 = vmatpush.bf16.msra.mxu0 %v792
        %983 = vmatpush.bf16.msra.mxu0 %v786
        %984 = vmatpush.bf16.msra.mxu0 %v780
        %985 = vmatpush.bf16.msra.mxu0 %v774
        %986 = vmatpush.bf16.msra.mxu0 %v768
        %987 = vmatpush.bf16.msra.mxu0 %v762
        %988 = vmatpush.bf16.msra.mxu0 %v756
        %989 = vmatpush.bf16.msra.mxu0 %v750
        %990 = vmatmul.bf16.gmra.mxu0 %v408
        %v991 = vpop.f32.mrf.mxu0
        %v992 = vadd.f32 %v979, %v991
        %v993 = vpop.f32.mrf.mxu0
        %994 = vdwg.mxu0
        %995 = vmatpush.bf16.msra.mxu0 %v745
        %996 = vmatpush.bf16.msra.mxu0 %v739
        %997 = vmatpush.bf16.msra.mxu0 %v733
        %998 = vmatpush.bf16.msra.mxu0 %v727
        %999 = vmatpush.bf16.msra.mxu0 %v721
        %1000 = vmatpush.bf16.msra.mxu0 %v715
        %1001 = vmatpush.bf16.msra.mxu0 %v709
        %1002 = vmatpush.bf16.msra.mxu0 %v703
        %1003 = vmatmul.bf16.gmra.mxu0 %v407
        %v1004 = vpop.f32.mrf.mxu0
        %v1005 = vadd.f32 0.0, %v1004
        %v1006 = vpop.f32.mrf.mxu0
        %1007 = vdwg.mxu0
        %1008 = vmatpush.bf16.msra.mxu0 %v793
        %1009 = vmatpush.bf16.msra.mxu0 %v787
        %1010 = vmatpush.bf16.msra.mxu0 %v781
        %1011 = vmatpush.bf16.msra.mxu0 %v775
        %1012 = vmatpush.bf16.msra.mxu0 %v769
        %1013 = vmatpush.bf16.msra.mxu0 %v763
        %1014 = vmatpush.bf16.msra.mxu0 %v757
        %1015 = vmatpush.bf16.msra.mxu0 %v751
        %1016 = vmatmul.bf16.gmra.mxu0 %v408
        %v1017 = vpop.f32.mrf.mxu0
        %v1018 = vadd.f32 %v1005, %v1017
        %v1019 = vpop.f32.mrf.mxu0
        %1020 = vdwg.mxu0
        %1021 = vmatpush.bf16.msra.mxu0 %v746
        %1022 = vmatpush.bf16.msra.mxu0 %v740
        %1023 = vmatpush.bf16.msra.mxu0 %v734
        %1024 = vmatpush.bf16.msra.mxu0 %v728
        %1025 = vmatpush.bf16.msra.mxu0 %v722
        %1026 = vmatpush.bf16.msra.mxu0 %v716
        %1027 = vmatpush.bf16.msra.mxu0 %v710
        %1028 = vmatpush.bf16.msra.mxu0 %v704
        %1029 = vmatmul.bf16.gmra.mxu0 %v407
        %v1030 = vpop.f32.mrf.mxu0
        %v1031 = vadd.f32 0.0, %v1030
        %v1032 = vpop.f32.mrf.mxu0
        %1033 = vdwg.mxu0
        %1034 = vmatpush.bf16.msra.mxu0 %v794
        %1035 = vmatpush.bf16.msra.mxu0 %v788
        %1036 = vmatpush.bf16.msra.mxu0 %v782
        %1037 = vmatpush.bf16.msra.mxu0 %v776
        %1038 = vmatpush.bf16.msra.mxu0 %v770
        %1039 = vmatpush.bf16.msra.mxu0 %v764
        %1040 = vmatpush.bf16.msra.mxu0 %v758
        %1041 = vmatpush.bf16.msra.mxu0 %v752
        %1042 = vmatmul.bf16.gmra.mxu0 %v408
        %v1043 = vpop.f32.mrf.mxu0
        %v1044 = vadd.f32 %v1031, %v1043
        %v1045 = vpop.f32.mrf.mxu0
        %1046 = vdwg.mxu0
        %v1048 = vperm.slane %v307, 0
        %v1049 = vperm.slane %v307, 1
        %v1052 = vpack.c.bf16 %v1048, %v1048
        %v1053 = vpack.c.bf16 %v1049, %v1049
        %v1054 = vld [vmem:[#allocation8] sm:$0xff]
        %v1055 = vld [vmem:[#allocation8 + $0x8] sm:$0xff]
        %v1056 = vld [vmem:[#allocation8 + $0x10] sm:$0xff]
        %v1057 = vld [vmem:[#allocation8 + $0x18] sm:$0xff]
        %v1058 = vld [vmem:[#allocation8 + $0x20] sm:$0xff]
        %v1059 = vld [vmem:[#allocation8 + $0x28] sm:$0xff]
        %v1060 = vld [vmem:[#allocation8 + $0x30] sm:$0xff]
        %v1061 = vld [vmem:[#allocation8 + $0x38] sm:$0xff]
        %v1062 = vld [vmem:[#allocation8 + $0x40] sm:$0xff]
        %v1063 = vld [vmem:[#allocation8 + $0x48] sm:$0xff]
        %v1064 = vld [vmem:[#allocation8 + $0x50] sm:$0xff]
        %v1065 = vld [vmem:[#allocation8 + $0x58] sm:$0xff]
        %v1066 = vld [vmem:[#allocation8 + $0x60] sm:$0xff]
        %v1067 = vld [vmem:[#allocation8 + $0x68] sm:$0xff]
        %v1068 = vld [vmem:[#allocation8 + $0x70] sm:$0xff]
        %v1069 = vld [vmem:[#allocation8 + $0x78] sm:$0xff]
        %v1070 = vld [vmem:[#allocation8 + $0x80] sm:$0xff]
        %v1071 = vld [vmem:[#allocation8 + $0x88] sm:$0xff]
        %v1072 = vld [vmem:[#allocation8 + $0x90] sm:$0xff]
        %v1073 = vld [vmem:[#allocation8 + $0x98] sm:$0xff]
        %v1074 = vld [vmem:[#allocation8 + $0xa0] sm:$0xff]
        %v1075 = vld [vmem:[#allocation8 + $0xa8] sm:$0xff]
        %v1076 = vld [vmem:[#allocation8 + $0xb0] sm:$0xff]
        %v1077 = vld [vmem:[#allocation8 + $0xb8] sm:$0xff]
        %v1078 = vld [vmem:[#allocation8 + $0xc0] sm:$0xff]
        %v1079 = vld [vmem:[#allocation8 + $0xc8] sm:$0xff]
        %v1080 = vld [vmem:[#allocation8 + $0xd0] sm:$0xff]
        %v1081 = vld [vmem:[#allocation8 + $0xd8] sm:$0xff]
        %v1082 = vld [vmem:[#allocation8 + $0xe0] sm:$0xff]
        %v1083 = vld [vmem:[#allocation8 + $0xe8] sm:$0xff]
        %v1084 = vld [vmem:[#allocation8 + $0xf0] sm:$0xff]
        %v1085 = vld [vmem:[#allocation8 + $0xf8] sm:$0xff]
        %v1086 = vld [vmem:[#allocation8 + $0x100] sm:$0xff]
        %v1087 = vld [vmem:[#allocation8 + $0x108] sm:$0xff]
        %v1088 = vld [vmem:[#allocation8 + $0x110] sm:$0xff]
        %v1089 = vld [vmem:[#allocation8 + $0x118] sm:$0xff]
        %v1090 = vld [vmem:[#allocation8 + $0x120] sm:$0xff]
        %v1091 = vld [vmem:[#allocation8 + $0x128] sm:$0xff]
        %v1092 = vld [vmem:[#allocation8 + $0x130] sm:$0xff]
        %v1093 = vld [vmem:[#allocation8 + $0x138] sm:$0xff]
        %v1094 = vld [vmem:[#allocation8 + $0x140] sm:$0xff]
        %v1095 = vld [vmem:[#allocation8 + $0x148] sm:$0xff]
        %v1096 = vld [vmem:[#allocation8 + $0x150] sm:$0xff]
        %v1097 = vld [vmem:[#allocation8 + $0x158] sm:$0xff]
        %v1098 = vld [vmem:[#allocation8 + $0x160] sm:$0xff]
        %v1099 = vld [vmem:[#allocation8 + $0x168] sm:$0xff]
        %v1100 = vld [vmem:[#allocation8 + $0x170] sm:$0xff]
        %v1101 = vld [vmem:[#allocation8 + $0x178] sm:$0xff]
        %v1102 = vld [vmem:[#allocation8 + $0x180] sm:$0xff]
        %v1103 = vld [vmem:[#allocation8 + $0x188] sm:$0xff]
        %v1104 = vld [vmem:[#allocation8 + $0x190] sm:$0xff]
        %v1105 = vld [vmem:[#allocation8 + $0x198] sm:$0xff]
        %v1106 = vld [vmem:[#allocation8 + $0x1a0] sm:$0xff]
        %v1107 = vld [vmem:[#allocation8 + $0x1a8] sm:$0xff]
        %v1108 = vld [vmem:[#allocation8 + $0x1b0] sm:$0xff]
        %v1109 = vld [vmem:[#allocation8 + $0x1b8] sm:$0xff]
        %v1110 = vld [vmem:[#allocation8 + $0x1c0] sm:$0xff]
        %v1111 = vld [vmem:[#allocation8 + $0x1c8] sm:$0xff]
        %v1112 = vld [vmem:[#allocation8 + $0x1d0] sm:$0xff]
        %v1113 = vld [vmem:[#allocation8 + $0x1d8] sm:$0xff]
        %v1114 = vld [vmem:[#allocation8 + $0x1e0] sm:$0xff]
        %v1115 = vld [vmem:[#allocation8 + $0x1e8] sm:$0xff]
        %v1116 = vld [vmem:[#allocation8 + $0x1f0] sm:$0xff]
        %v1117 = vld [vmem:[#allocation8 + $0x1f8] sm:$0xff]
        %v1118 = vld [vmem:[#allocation8 + $0x200] sm:$0xff]
        %v1119 = vld [vmem:[#allocation8 + $0x208] sm:$0xff]
        %v1120 = vld [vmem:[#allocation8 + $0x210] sm:$0xff]
        %v1121 = vld [vmem:[#allocation8 + $0x218] sm:$0xff]
        %v1122 = vld [vmem:[#allocation8 + $0x220] sm:$0xff]
        %v1123 = vld [vmem:[#allocation8 + $0x228] sm:$0xff]
        %v1124 = vld [vmem:[#allocation8 + $0x230] sm:$0xff]
        %v1125 = vld [vmem:[#allocation8 + $0x238] sm:$0xff]
        %v1126 = vld [vmem:[#allocation8 + $0x240] sm:$0xff]
        %v1127 = vld [vmem:[#allocation8 + $0x248] sm:$0xff]
        %v1128 = vld [vmem:[#allocation8 + $0x250] sm:$0xff]
        %v1129 = vld [vmem:[#allocation8 + $0x258] sm:$0xff]
        %v1130 = vld [vmem:[#allocation8 + $0x260] sm:$0xff]
        %v1131 = vld [vmem:[#allocation8 + $0x268] sm:$0xff]
        %v1132 = vld [vmem:[#allocation8 + $0x270] sm:$0xff]
        %v1133 = vld [vmem:[#allocation8 + $0x278] sm:$0xff]
        %v1134 = vld [vmem:[#allocation8 + $0x280] sm:$0xff]
        %v1135 = vld [vmem:[#allocation8 + $0x288] sm:$0xff]
        %v1136 = vld [vmem:[#allocation8 + $0x290] sm:$0xff]
        %v1137 = vld [vmem:[#allocation8 + $0x298] sm:$0xff]
        %v1138 = vld [vmem:[#allocation8 + $0x2a0] sm:$0xff]
        %v1139 = vld [vmem:[#allocation8 + $0x2a8] sm:$0xff]
        %v1140 = vld [vmem:[#allocation8 + $0x2b0] sm:$0xff]
        %v1141 = vld [vmem:[#allocation8 + $0x2b8] sm:$0xff]
        %v1142 = vld [vmem:[#allocation8 + $0x2c0] sm:$0xff]
        %v1143 = vld [vmem:[#allocation8 + $0x2c8] sm:$0xff]
        %v1144 = vld [vmem:[#allocation8 + $0x2d0] sm:$0xff]
        %v1145 = vld [vmem:[#allocation8 + $0x2d8] sm:$0xff]
        %v1146 = vld [vmem:[#allocation8 + $0x2e0] sm:$0xff]
        %v1147 = vld [vmem:[#allocation8 + $0x2e8] sm:$0xff]
        %v1148 = vld [vmem:[#allocation8 + $0x2f0] sm:$0xff]
        %v1149 = vld [vmem:[#allocation8 + $0x2f8] sm:$0xff]
        %v1246 = vunpack.c.l.b16 %v1054
        %v1247 = vunpack.c.h.b16 %v1054
        %v1248 = vunpack.c.l.b16 %v1055
        %v1249 = vunpack.c.h.b16 %v1055
        %v1250 = vunpack.c.l.b16 %v1056
        %v1251 = vunpack.c.h.b16 %v1056
        %v1252 = vunpack.c.l.b16 %v1057
        %v1253 = vunpack.c.h.b16 %v1057
        %v1254 = vunpack.c.l.b16 %v1058
        %v1255 = vunpack.c.h.b16 %v1058
        %v1256 = vunpack.c.l.b16 %v1059
        %v1257 = vunpack.c.h.b16 %v1059
        %v1258 = vunpack.c.l.b16 %v1060
        %v1259 = vunpack.c.h.b16 %v1060
        %v1260 = vunpack.c.l.b16 %v1061
        %v1261 = vunpack.c.h.b16 %v1061
        %v1262 = vunpack.c.l.b16 %v1062
        %v1263 = vunpack.c.h.b16 %v1062
        %v1264 = vunpack.c.l.b16 %v1063
        %v1265 = vunpack.c.h.b16 %v1063
        %v1266 = vunpack.c.l.b16 %v1064
        %v1267 = vunpack.c.h.b16 %v1064
        %v1268 = vunpack.c.l.b16 %v1065
        %v1269 = vunpack.c.h.b16 %v1065
        %v1270 = vunpack.c.l.b16 %v1066
        %v1271 = vunpack.c.h.b16 %v1066
        %v1272 = vunpack.c.l.b16 %v1067
        %v1273 = vunpack.c.h.b16 %v1067
        %v1274 = vunpack.c.l.b16 %v1068
        %v1275 = vunpack.c.h.b16 %v1068
        %v1276 = vunpack.c.l.b16 %v1069
        %v1277 = vunpack.c.h.b16 %v1069
        %v1278 = vunpack.c.l.b16 %v1070
        %v1279 = vunpack.c.h.b16 %v1070
        %v1280 = vunpack.c.l.b16 %v1071
        %v1281 = vunpack.c.h.b16 %v1071
        %v1282 = vunpack.c.l.b16 %v1072
        %v1283 = vunpack.c.h.b16 %v1072
        %v1284 = vunpack.c.l.b16 %v1073
        %v1285 = vunpack.c.h.b16 %v1073
        %v1286 = vunpack.c.l.b16 %v1074
        %v1287 = vunpack.c.h.b16 %v1074
        %v1288 = vunpack.c.l.b16 %v1075
        %v1289 = vunpack.c.h.b16 %v1075
        %v1290 = vunpack.c.l.b16 %v1076
        %v1291 = vunpack.c.h.b16 %v1076
        %v1292 = vunpack.c.l.b16 %v1077
        %v1293 = vunpack.c.h.b16 %v1077
        %v1294 = vunpack.c.l.b16 %v1078
        %v1295 = vunpack.c.h.b16 %v1078
        %v1296 = vunpack.c.l.b16 %v1079
        %v1297 = vunpack.c.h.b16 %v1079
        %v1298 = vunpack.c.l.b16 %v1080
        %v1299 = vunpack.c.h.b16 %v1080
        %v1300 = vunpack.c.l.b16 %v1081
        %v1301 = vunpack.c.h.b16 %v1081
        %v1302 = vunpack.c.l.b16 %v1082
        %v1303 = vunpack.c.h.b16 %v1082
        %v1304 = vunpack.c.l.b16 %v1083
        %v1305 = vunpack.c.h.b16 %v1083
        %v1306 = vunpack.c.l.b16 %v1084
        %v1307 = vunpack.c.h.b16 %v1084
        %v1308 = vunpack.c.l.b16 %v1085
        %v1309 = vunpack.c.h.b16 %v1085
        %v1310 = vunpack.c.l.b16 %v1086
        %v1311 = vunpack.c.h.b16 %v1086
        %v1312 = vunpack.c.l.b16 %v1087
        %v1313 = vunpack.c.h.b16 %v1087
        %v1314 = vunpack.c.l.b16 %v1088
        %v1315 = vunpack.c.h.b16 %v1088
        %v1316 = vunpack.c.l.b16 %v1089
        %v1317 = vunpack.c.h.b16 %v1089
        %v1318 = vunpack.c.l.b16 %v1090
        %v1319 = vunpack.c.h.b16 %v1090
        %v1320 = vunpack.c.l.b16 %v1091
        %v1321 = vunpack.c.h.b16 %v1091
        %v1322 = vunpack.c.l.b16 %v1092
        %v1323 = vunpack.c.h.b16 %v1092
        %v1324 = vunpack.c.l.b16 %v1093
        %v1325 = vunpack.c.h.b16 %v1093
        %v1326 = vunpack.c.l.b16 %v1094
        %v1327 = vunpack.c.h.b16 %v1094
        %v1328 = vunpack.c.l.b16 %v1095
        %v1329 = vunpack.c.h.b16 %v1095
        %v1330 = vunpack.c.l.b16 %v1096
        %v1331 = vunpack.c.h.b16 %v1096
        %v1332 = vunpack.c.l.b16 %v1097
        %v1333 = vunpack.c.h.b16 %v1097
        %v1334 = vunpack.c.l.b16 %v1098
        %v1335 = vunpack.c.h.b16 %v1098
        %v1336 = vunpack.c.l.b16 %v1099
        %v1337 = vunpack.c.h.b16 %v1099
        %v1338 = vunpack.c.l.b16 %v1100
        %v1339 = vunpack.c.h.b16 %v1100
        %v1340 = vunpack.c.l.b16 %v1101
        %v1341 = vunpack.c.h.b16 %v1101
        %v1342 = vunpack.c.l.b16 %v1102
        %v1343 = vunpack.c.h.b16 %v1102
        %v1344 = vunpack.c.l.b16 %v1103
        %v1345 = vunpack.c.h.b16 %v1103
        %v1346 = vunpack.c.l.b16 %v1104
        %v1347 = vunpack.c.h.b16 %v1104
        %v1348 = vunpack.c.l.b16 %v1105
        %v1349 = vunpack.c.h.b16 %v1105
        %v1350 = vunpack.c.l.b16 %v1106
        %v1351 = vunpack.c.h.b16 %v1106
        %v1352 = vunpack.c.l.b16 %v1107
        %v1353 = vunpack.c.h.b16 %v1107
        %v1354 = vunpack.c.l.b16 %v1108
        %v1355 = vunpack.c.h.b16 %v1108
        %v1356 = vunpack.c.l.b16 %v1109
        %v1357 = vunpack.c.h.b16 %v1109
        %v1358 = vunpack.c.l.b16 %v1110
        %v1359 = vunpack.c.h.b16 %v1110
        %v1360 = vunpack.c.l.b16 %v1111
        %v1361 = vunpack.c.h.b16 %v1111
        %v1362 = vunpack.c.l.b16 %v1112
        %v1363 = vunpack.c.h.b16 %v1112
        %v1364 = vunpack.c.l.b16 %v1113
        %v1365 = vunpack.c.h.b16 %v1113
        %v1366 = vunpack.c.l.b16 %v1114
        %v1367 = vunpack.c.h.b16 %v1114
        %v1368 = vunpack.c.l.b16 %v1115
        %v1369 = vunpack.c.h.b16 %v1115
        %v1370 = vunpack.c.l.b16 %v1116
        %v1371 = vunpack.c.h.b16 %v1116
        %v1372 = vunpack.c.l.b16 %v1117
        %v1373 = vunpack.c.h.b16 %v1117
        %v1374 = vunpack.c.l.b16 %v1118
        %v1375 = vunpack.c.h.b16 %v1118
        %v1376 = vunpack.c.l.b16 %v1119
        %v1377 = vunpack.c.h.b16 %v1119
        %v1378 = vunpack.c.l.b16 %v1120
        %v1379 = vunpack.c.h.b16 %v1120
        %v1380 = vunpack.c.l.b16 %v1121
        %v1381 = vunpack.c.h.b16 %v1121
        %v1382 = vunpack.c.l.b16 %v1122
        %v1383 = vunpack.c.h.b16 %v1122
        %v1384 = vunpack.c.l.b16 %v1123
        %v1385 = vunpack.c.h.b16 %v1123
        %v1386 = vunpack.c.l.b16 %v1124
        %v1387 = vunpack.c.h.b16 %v1124
        %v1388 = vunpack.c.l.b16 %v1125
        %v1389 = vunpack.c.h.b16 %v1125
        %v1390 = vunpack.c.l.b16 %v1126
        %v1391 = vunpack.c.h.b16 %v1126
        %v1392 = vunpack.c.l.b16 %v1127
        %v1393 = vunpack.c.h.b16 %v1127
        %v1394 = vunpack.c.l.b16 %v1128
        %v1395 = vunpack.c.h.b16 %v1128
        %v1396 = vunpack.c.l.b16 %v1129
        %v1397 = vunpack.c.h.b16 %v1129
        %v1398 = vunpack.c.l.b16 %v1130
        %v1399 = vunpack.c.h.b16 %v1130
        %v1400 = vunpack.c.l.b16 %v1131
        %v1401 = vunpack.c.h.b16 %v1131
        %v1402 = vunpack.c.l.b16 %v1132
        %v1403 = vunpack.c.h.b16 %v1132
        %v1404 = vunpack.c.l.b16 %v1133
        %v1405 = vunpack.c.h.b16 %v1133
        %v1406 = vunpack.c.l.b16 %v1134
        %v1407 = vunpack.c.h.b16 %v1134
        %v1408 = vunpack.c.l.b16 %v1135
        %v1409 = vunpack.c.h.b16 %v1135
        %v1410 = vunpack.c.l.b16 %v1136
        %v1411 = vunpack.c.h.b16 %v1136
        %v1412 = vunpack.c.l.b16 %v1137
        %v1413 = vunpack.c.h.b16 %v1137
        %v1414 = vunpack.c.l.b16 %v1138
        %v1415 = vunpack.c.h.b16 %v1138
        %v1416 = vunpack.c.l.b16 %v1139
        %v1417 = vunpack.c.h.b16 %v1139
        %v1418 = vunpack.c.l.b16 %v1140
        %v1419 = vunpack.c.h.b16 %v1140
        %v1420 = vunpack.c.l.b16 %v1141
        %v1421 = vunpack.c.h.b16 %v1141
        %v1422 = vunpack.c.l.b16 %v1142
        %v1423 = vunpack.c.h.b16 %v1142
        %v1424 = vunpack.c.l.b16 %v1143
        %v1425 = vunpack.c.h.b16 %v1143
        %v1426 = vunpack.c.l.b16 %v1144
        %v1427 = vunpack.c.h.b16 %v1144
        %v1428 = vunpack.c.l.b16 %v1145
        %v1429 = vunpack.c.h.b16 %v1145
        %v1430 = vunpack.c.l.b16 %v1146
        %v1431 = vunpack.c.h.b16 %v1146
        %v1432 = vunpack.c.l.b16 %v1147
        %v1433 = vunpack.c.h.b16 %v1147
        %v1434 = vunpack.c.l.b16 %v1148
        %v1435 = vunpack.c.h.b16 %v1148
        %v1436 = vunpack.c.l.b16 %v1149
        %v1437 = vunpack.c.h.b16 %v1149
        %v1438 = vpack.c.b16 %v1252, %v1246
        %v1439 = vpack.c.b16 %v1253, %v1247
        %v1440 = vpack.c.b16 %v1254, %v1248
        %v1441 = vpack.c.b16 %v1255, %v1249
        %v1442 = vpack.c.b16 %v1256, %v1250
        %v1443 = vpack.c.b16 %v1257, %v1251
        %v1444 = vpack.c.b16 %v1264, %v1258
        %v1445 = vpack.c.b16 %v1265, %v1259
        %v1446 = vpack.c.b16 %v1266, %v1260
        %v1447 = vpack.c.b16 %v1267, %v1261
        %v1448 = vpack.c.b16 %v1268, %v1262
        %v1449 = vpack.c.b16 %v1269, %v1263
        %v1450 = vpack.c.b16 %v1276, %v1270
        %v1451 = vpack.c.b16 %v1277, %v1271
        %v1452 = vpack.c.b16 %v1278, %v1272
        %v1453 = vpack.c.b16 %v1279, %v1273
        %v1454 = vpack.c.b16 %v1280, %v1274
        %v1455 = vpack.c.b16 %v1281, %v1275
        %v1456 = vpack.c.b16 %v1288, %v1282
        %v1457 = vpack.c.b16 %v1289, %v1283
        %v1458 = vpack.c.b16 %v1290, %v1284
        %v1459 = vpack.c.b16 %v1291, %v1285
        %v1460 = vpack.c.b16 %v1292, %v1286
        %v1461 = vpack.c.b16 %v1293, %v1287
        %v1462 = vpack.c.b16 %v1300, %v1294
        %v1463 = vpack.c.b16 %v1301, %v1295
        %v1464 = vpack.c.b16 %v1302, %v1296
        %v1465 = vpack.c.b16 %v1303, %v1297
        %v1466 = vpack.c.b16 %v1304, %v1298
        %v1467 = vpack.c.b16 %v1305, %v1299
        %v1468 = vpack.c.b16 %v1312, %v1306
        %v1469 = vpack.c.b16 %v1313, %v1307
        %v1470 = vpack.c.b16 %v1314, %v1308
        %v1471 = vpack.c.b16 %v1315, %v1309
        %v1472 = vpack.c.b16 %v1316, %v1310
        %v1473 = vpack.c.b16 %v1317, %v1311
        %v1474 = vpack.c.b16 %v1324, %v1318
        %v1475 = vpack.c.b16 %v1325, %v1319
        %v1476 = vpack.c.b16 %v1326, %v1320
        %v1477 = vpack.c.b16 %v1327, %v1321
        %v1478 = vpack.c.b16 %v1328, %v1322
        %v1479 = vpack.c.b16 %v1329, %v1323
        %v1480 = vpack.c.b16 %v1336, %v1330
        %v1481 = vpack.c.b16 %v1337, %v1331
        %v1482 = vpack.c.b16 %v1338, %v1332
        %v1483 = vpack.c.b16 %v1339, %v1333
        %v1484 = vpack.c.b16 %v1340, %v1334
        %v1485 = vpack.c.b16 %v1341, %v1335
        %v1486 = vpack.c.b16 %v1348, %v1342
        %v1487 = vpack.c.b16 %v1349, %v1343
        %v1488 = vpack.c.b16 %v1350, %v1344
        %v1489 = vpack.c.b16 %v1351, %v1345
        %v1490 = vpack.c.b16 %v1352, %v1346
        %v1491 = vpack.c.b16 %v1353, %v1347
        %v1492 = vpack.c.b16 %v1360, %v1354
        %v1493 = vpack.c.b16 %v1361, %v1355
        %v1494 = vpack.c.b16 %v1362, %v1356
        %v1495 = vpack.c.b16 %v1363, %v1357
        %v1496 = vpack.c.b16 %v1364, %v1358
        %v1497 = vpack.c.b16 %v1365, %v1359
        %v1498 = vpack.c.b16 %v1372, %v1366
        %v1499 = vpack.c.b16 %v1373, %v1367
        %v1500 = vpack.c.b16 %v1374, %v1368
        %v1501 = vpack.c.b16 %v1375, %v1369
        %v1502 = vpack.c.b16 %v1376, %v1370
        %v1503 = vpack.c.b16 %v1377, %v1371
        %v1504 = vpack.c.b16 %v1384, %v1378
        %v1505 = vpack.c.b16 %v1385, %v1379
        %v1506 = vpack.c.b16 %v1386, %v1380
        %v1507 = vpack.c.b16 %v1387, %v1381
        %v1508 = vpack.c.b16 %v1388, %v1382
        %v1509 = vpack.c.b16 %v1389, %v1383
        %v1510 = vpack.c.b16 %v1396, %v1390
        %v1511 = vpack.c.b16 %v1397, %v1391
        %v1512 = vpack.c.b16 %v1398, %v1392
        %v1513 = vpack.c.b16 %v1399, %v1393
        %v1514 = vpack.c.b16 %v1400, %v1394
        %v1515 = vpack.c.b16 %v1401, %v1395
        %v1516 = vpack.c.b16 %v1408, %v1402
        %v1517 = vpack.c.b16 %v1409, %v1403
        %v1518 = vpack.c.b16 %v1410, %v1404
        %v1519 = vpack.c.b16 %v1411, %v1405
        %v1520 = vpack.c.b16 %v1412, %v1406
        %v1521 = vpack.c.b16 %v1413, %v1407
        %v1522 = vpack.c.b16 %v1420, %v1414
        %v1523 = vpack.c.b16 %v1421, %v1415
        %v1524 = vpack.c.b16 %v1422, %v1416
        %v1525 = vpack.c.b16 %v1423, %v1417
        %v1526 = vpack.c.b16 %v1424, %v1418
        %v1527 = vpack.c.b16 %v1425, %v1419
        %v1528 = vpack.c.b16 %v1432, %v1426
        %v1529 = vpack.c.b16 %v1433, %v1427
        %v1530 = vpack.c.b16 %v1434, %v1428
        %v1531 = vpack.c.b16 %v1435, %v1429
        %v1532 = vpack.c.b16 %v1436, %v1430
        %v1533 = vpack.c.b16 %v1437, %v1431
        %1630 = vmatpush.bf16.msra.mxu0 %v1480
        %1631 = vmatpush.bf16.msra.mxu0 %v1474
        %1632 = vmatpush.bf16.msra.mxu0 %v1468
        %1633 = vmatpush.bf16.msra.mxu0 %v1462
        %1634 = vmatpush.bf16.msra.mxu0 %v1456
        %1635 = vmatpush.bf16.msra.mxu0 %v1450
        %1636 = vmatpush.bf16.msra.mxu0 %v1444
        %1637 = vmatpush.bf16.msra.mxu0 %v1438
        %1638 = vmatmul.bf16.gmra.mxu0 %v1052
        %v1639 = vpop.f32.mrf.mxu0
        %v1640 = vadd.f32 0.0, %v1639
        %v1641 = vpop.f32.mrf.mxu0
        %1642 = vdwg.mxu0
        %1643 = vmatpush.bf16.msra.mxu0 %v1528
        %1644 = vmatpush.bf16.msra.mxu0 %v1522
        %1645 = vmatpush.bf16.msra.mxu0 %v1516
        %1646 = vmatpush.bf16.msra.mxu0 %v1510
        %1647 = vmatpush.bf16.msra.mxu0 %v1504
        %1648 = vmatpush.bf16.msra.mxu0 %v1498
        %1649 = vmatpush.bf16.msra.mxu0 %v1492
        %1650 = vmatpush.bf16.msra.mxu0 %v1486
        %1651 = vmatmul.bf16.gmra.mxu0 %v1053
        %v1652 = vpop.f32.mrf.mxu0
        %v1653 = vadd.f32 %v1640, %v1652
        %v1654 = vpop.f32.mrf.mxu0
        %1655 = vdwg.mxu0
        %1656 = vmatpush.bf16.msra.mxu0 %v1481
        %1657 = vmatpush.bf16.msra.mxu0 %v1475
        %1658 = vmatpush.bf16.msra.mxu0 %v1469
        %1659 = vmatpush.bf16.msra.mxu0 %v1463
        %1660 = vmatpush.bf16.msra.mxu0 %v1457
        %1661 = vmatpush.bf16.msra.mxu0 %v1451
        %1662 = vmatpush.bf16.msra.mxu0 %v1445
        %1663 = vmatpush.bf16.msra.mxu0 %v1439
        %1664 = vmatmul.bf16.gmra.mxu0 %v1052
        %v1665 = vpop.f32.mrf.mxu0
        %v1666 = vadd.f32 0.0, %v1665
        %v1667 = vpop.f32.mrf.mxu0
        %1668 = vdwg.mxu0
        %1669 = vmatpush.bf16.msra.mxu0 %v1529
        %1670 = vmatpush.bf16.msra.mxu0 %v1523
        %1671 = vmatpush.bf16.msra.mxu0 %v1517
        %1672 = vmatpush.bf16.msra.mxu0 %v1511
        %1673 = vmatpush.bf16.msra.mxu0 %v1505
        %1674 = vmatpush.bf16.msra.mxu0 %v1499
        %1675 = vmatpush.bf16.msra.mxu0 %v1493
        %1676 = vmatpush.bf16.msra.mxu0 %v1487
        %1677 = vmatmul.bf16.gmra.mxu0 %v1053
        %v1678 = vpop.f32.mrf.mxu0
        %v1679 = vadd.f32 %v1666, %v1678
        %v1680 = vpop.f32.mrf.mxu0
        %1681 = vdwg.mxu0
        %1682 = vmatpush.bf16.msra.mxu0 %v1482
        %1683 = vmatpush.bf16.msra.mxu0 %v1476
        %1684 = vmatpush.bf16.msra.mxu0 %v1470
        %1685 = vmatpush.bf16.msra.mxu0 %v1464
        %1686 = vmatpush.bf16.msra.mxu0 %v1458
        %1687 = vmatpush.bf16.msra.mxu0 %v1452
        %1688 = vmatpush.bf16.msra.mxu0 %v1446
        %1689 = vmatpush.bf16.msra.mxu0 %v1440
        %1690 = vmatmul.bf16.gmra.mxu0 %v1052
        %v1691 = vpop.f32.mrf.mxu0
        %v1692 = vadd.f32 0.0, %v1691
        %v1693 = vpop.f32.mrf.mxu0
        %1694 = vdwg.mxu0
        %1695 = vmatpush.bf16.msra.mxu0 %v1530
        %1696 = vmatpush.bf16.msra.mxu0 %v1524
        %1697 = vmatpush.bf16.msra.mxu0 %v1518
        %1698 = vmatpush.bf16.msra.mxu0 %v1512
        %1699 = vmatpush.bf16.msra.mxu0 %v1506
        %1700 = vmatpush.bf16.msra.mxu0 %v1500
        %1701 = vmatpush.bf16.msra.mxu0 %v1494
        %1702 = vmatpush.bf16.msra.mxu0 %v1488
        %1703 = vmatmul.bf16.gmra.mxu0 %v1053
        %v1704 = vpop.f32.mrf.mxu0
        %v1705 = vadd.f32 %v1692, %v1704
        %v1706 = vpop.f32.mrf.mxu0
        %1707 = vdwg.mxu0
        %1708 = vmatpush.bf16.msra.mxu0 %v1483
        %1709 = vmatpush.bf16.msra.mxu0 %v1477
        %1710 = vmatpush.bf16.msra.mxu0 %v1471
        %1711 = vmatpush.bf16.msra.mxu0 %v1465
        %1712 = vmatpush.bf16.msra.mxu0 %v1459
        %1713 = vmatpush.bf16.msra.mxu0 %v1453
        %1714 = vmatpush.bf16.msra.mxu0 %v1447
        %1715 = vmatpush.bf16.msra.mxu0 %v1441
        %1716 = vmatmul.bf16.gmra.mxu0 %v1052
        %v1717 = vpop.f32.mrf.mxu0
        %v1718 = vadd.f32 0.0, %v1717
        %v1719 = vpop.f32.mrf.mxu0
        %1720 = vdwg.mxu0
        %1721 = vmatpush.bf16.msra.mxu0 %v1531
        %1722 = vmatpush.bf16.msra.mxu0 %v1525
        %1723 = vmatpush.bf16.msra.mxu0 %v1519
        %1724 = vmatpush.bf16.msra.mxu0 %v1513
        %1725 = vmatpush.bf16.msra.mxu0 %v1507
        %1726 = vmatpush.bf16.msra.mxu0 %v1501
        %1727 = vmatpush.bf16.msra.mxu0 %v1495
        %1728 = vmatpush.bf16.msra.mxu0 %v1489
        %1729 = vmatmul.bf16.gmra.mxu0 %v1053
        %v1730 = vpop.f32.mrf.mxu0
        %v1731 = vadd.f32 %v1718, %v1730
        %v1732 = vpop.f32.mrf.mxu0
        %1733 = vdwg.mxu0
        %1734 = vmatpush.bf16.msra.mxu0 %v1484
        %1735 = vmatpush.bf16.msra.mxu0 %v1478
        %1736 = vmatpush.bf16.msra.mxu0 %v1472
        %1737 = vmatpush.bf16.msra.mxu0 %v1466
        %1738 = vmatpush.bf16.msra.mxu0 %v1460
        %1739 = vmatpush.bf16.msra.mxu0 %v1454
        %1740 = vmatpush.bf16.msra.mxu0 %v1448
        %1741 = vmatpush.bf16.msra.mxu0 %v1442
        %1742 = vmatmul.bf16.gmra.mxu0 %v1052
        %v1743 = vpop.f32.mrf.mxu0
        %v1744 = vadd.f32 0.0, %v1743
        %v1745 = vpop.f32.mrf.mxu0
        %1746 = vdwg.mxu0
        %1747 = vmatpush.bf16.msra.mxu0 %v1532
        %1748 = vmatpush.bf16.msra.mxu0 %v1526
        %1749 = vmatpush.bf16.msra.mxu0 %v1520
        %1750 = vmatpush.bf16.msra.mxu0 %v1514
        %1751 = vmatpush.bf16.msra.mxu0 %v1508
        %1752 = vmatpush.bf16.msra.mxu0 %v1502
        %1753 = vmatpush.bf16.msra.mxu0 %v1496
        %1754 = vmatpush.bf16.msra.mxu0 %v1490
        %1755 = vmatmul.bf16.gmra.mxu0 %v1053
        %v1756 = vpop.f32.mrf.mxu0
        %v1757 = vadd.f32 %v1744, %v1756
        %v1758 = vpop.f32.mrf.mxu0
        %1759 = vdwg.mxu0
        %1760 = vmatpush.bf16.msra.mxu0 %v1485
        %1761 = vmatpush.bf16.msra.mxu0 %v1479
        %1762 = vmatpush.bf16.msra.mxu0 %v1473
        %1763 = vmatpush.bf16.msra.mxu0 %v1467
        %1764 = vmatpush.bf16.msra.mxu0 %v1461
        %1765 = vmatpush.bf16.msra.mxu0 %v1455
        %1766 = vmatpush.bf16.msra.mxu0 %v1449
        %1767 = vmatpush.bf16.msra.mxu0 %v1443
        %1768 = vmatmul.bf16.gmra.mxu0 %v1052
        %v1769 = vpop.f32.mrf.mxu0
        %v1770 = vadd.f32 0.0, %v1769
        %v1771 = vpop.f32.mrf.mxu0
        %1772 = vdwg.mxu0
        %1773 = vmatpush.bf16.msra.mxu0 %v1533
        %1774 = vmatpush.bf16.msra.mxu0 %v1527
        %1775 = vmatpush.bf16.msra.mxu0 %v1521
        %1776 = vmatpush.bf16.msra.mxu0 %v1515
        %1777 = vmatpush.bf16.msra.mxu0 %v1509
        %1778 = vmatpush.bf16.msra.mxu0 %v1503
        %1779 = vmatpush.bf16.msra.mxu0 %v1497
        %1780 = vmatpush.bf16.msra.mxu0 %v1491
        %1781 = vmatmul.bf16.gmra.mxu0 %v1053
        %v1782 = vpop.f32.mrf.mxu0
        %v1783 = vadd.f32 %v1770, %v1782
        %v1784 = vpop.f32.mrf.mxu0
        %1785 = vdwg.mxu0
        %v1786 = vld [vmem:[%s5] sm:$0x3f]
        %v1787 = vld [vmem:[%s6] sm:$0x3]
        %v1788 = vadd.f32 %v914, %v1653
        %v1789 = vadd.f32 %v940, %v1679
        %v1791 = vperm.slane %v1786, 0
        %v1792 = vperm.slane %v1786, 1
        %v1795 = vadd.f32 %v1788, %v1791
        %v1796 = vadd.f32 %v1789, %v1792
        %v1797 = vxor.u32 %v1795, 2147483648
        %v1798 = vxor.u32 %v1796, 2147483648
        %v1799 = vmul.f32 %v1797, 1.442695
        %v1800 = vpow.pop %v1799
        %v1801 = vmul.f32 %v1798, 1.442695
        %v1802 = vpow.pop %v1801
        %v1803 = vadd.f32 %v1800, 1.0
        %v1804 = vadd.f32 %v1802, 1.0
        %v1805 = vrcp.pop %v1803
        %v1806 = vmul.f32 %v1803, %v1805
        %v1807 = vsub.f32 1.0, %v1806
        %v1808 = vmul.f32 %v1805, %v1807
        %v1809 = vadd.f32 %v1805, %v1808
        %vm1810 = vweird.f32 %v1803
        %vm1811 = vweird.f32 %v1805
        %vm1812 = vmor %vm1810, %vm1811
        %v1813 = vsel %vm1812, %v1805, %v1809
        %v1814 = vand.u32 2147483647, %v1803
        %vm1815 = vcmp.eq.f32.partialorder %v1814, 8.507059e+37
        %v1816 = vand.u32 %v1803, 2147483648
        %v1817 = vor.u32 1.1754944e-38, %v1816
        %v1818 = vsel %vm1815, %v1817, %v1813
        %v1819 = vmul.f32 1.0, %v1818
        %v1820 = vrcp.pop %v1804
        %v1821 = vmul.f32 %v1804, %v1820
        %v1822 = vsub.f32 1.0, %v1821
        %v1823 = vmul.f32 %v1820, %v1822
        %v1824 = vadd.f32 %v1820, %v1823
        %vm1825 = vweird.f32 %v1804
        %vm1826 = vweird.f32 %v1820
        %vm1827 = vmor %vm1825, %vm1826
        %v1828 = vsel %vm1827, %v1820, %v1824
        %v1829 = vand.u32 2147483647, %v1804
        %vm1830 = vcmp.eq.f32.partialorder %v1829, 8.507059e+37
        %v1831 = vand.u32 %v1804, 2147483648
        %v1832 = vor.u32 1.1754944e-38, %v1831
        %v1833 = vsel %vm1830, %v1832, %v1828
        %v1834 = vmul.f32 1.0, %v1833
        %v1835 = vadd.f32 %v966, %v1705
        %v1836 = vadd.f32 %v992, %v1731
        %v1837 = vperm.slane %v1786, 2
        %v1838 = vperm.slane %v1786, 3
        %v1841 = vadd.f32 %v1835, %v1837
        %v1842 = vadd.f32 %v1836, %v1838
        %v1843 = vxor.u32 %v1841, 2147483648
        %v1844 = vxor.u32 %v1842, 2147483648
        %v1845 = vmul.f32 %v1843, 1.442695
        %v1846 = vpow.pop %v1845
        %v1847 = vmul.f32 %v1844, 1.442695
        %v1848 = vpow.pop %v1847
        %v1849 = vadd.f32 %v1846, 1.0
        %v1850 = vadd.f32 %v1848, 1.0
        %v1851 = vrcp.pop %v1849
        %v1852 = vmul.f32 %v1849, %v1851
        %v1853 = vsub.f32 1.0, %v1852
        %v1854 = vmul.f32 %v1851, %v1853
        %v1855 = vadd.f32 %v1851, %v1854
        %vm1856 = vweird.f32 %v1849
        %vm1857 = vweird.f32 %v1851
        %vm1858 = vmor %vm1856, %vm1857
        %v1859 = vsel %vm1858, %v1851, %v1855
        %v1860 = vand.u32 2147483647, %v1849
        %vm1861 = vcmp.eq.f32.partialorder %v1860, 8.507059e+37
        %v1862 = vand.u32 %v1849, 2147483648
        %v1863 = vor.u32 1.1754944e-38, %v1862
        %v1864 = vsel %vm1861, %v1863, %v1859
        %v1865 = vmul.f32 1.0, %v1864
        %v1866 = vrcp.pop %v1850
        %v1867 = vmul.f32 %v1850, %v1866
        %v1868 = vsub.f32 1.0, %v1867
        %v1869 = vmul.f32 %v1866, %v1868
        %v1870 = vadd.f32 %v1866, %v1869
        %vm1871 = vweird.f32 %v1850
        %vm1872 = vweird.f32 %v1866
        %vm1873 = vmor %vm1871, %vm1872
        %v1874 = vsel %vm1873, %v1866, %v1870
        %v1875 = vand.u32 2147483647, %v1850
        %vm1876 = vcmp.eq.f32.partialorder %v1875, 8.507059e+37
        %v1877 = vand.u32 %v1850, 2147483648
        %v1878 = vor.u32 1.1754944e-38, %v1877
        %v1879 = vsel %vm1876, %v1878, %v1874
        %v1880 = vmul.f32 1.0, %v1879
        %v1881 = vperm.slane %v1786, 4
        %v1882 = vperm.slane %v1786, 5
        %v1885 = vadd.f32 %v1018, %v1881
        %v1886 = vadd.f32 %v1044, %v1882
        %v1888 = vperm.slane %v1787, 0
        %v1889 = vperm.slane %v1787, 1
        %v1892 = vadd.f32 %v1757, %v1888
        %v1893 = vadd.f32 %v1783, %v1889
        %v1894 = vmul.f32 %v1819, %v1892
        %v1895 = vmul.f32 %v1834, %v1893
        %v1896 = vadd.f32 %v1885, %v1894
        %v1897 = vadd.f32 %v1886, %v1895
        %v1898 = vtanh.pop %v1896
        %v1899 = vtanh.pop %v1897
        %v1900 = vsub.f32 1.0, %v1865
        %v1901 = vsub.f32 1.0, %v1880
        %v1902 = vmul.f32 %v1900, %v1898
        %v1903 = vmul.f32 %v1901, %v1899
        %v1904 = vmul.f32 %v1865, %v1048
        %v1905 = vmul.f32 %v1880, %v1049
        %v1906 = vadd.f32 %v1902, %v1904
        %v1907 = vadd.f32 %v1903, %v1905
        %v1910 = vrot.slane %v1907, 7
        %vm1911 = vcmask 1040384
        %v1912 = vsel %vm1911, %v1906, %v1910
        %v1914 = vlaneseq
        %vm1915 = vcmp.ge.s32.totalorder %v1914, 0
        %vm1916 = vcmp.lt.s32.totalorder %v1914, 256
        %vm1917 = vmand %vm1915, %vm1916
        %1918 = vst.msk [vmem:[#allocation2] sm:$0x3] %vm1917, %v1912
        %1919 = vst.msk [vmem:[%s290] sm:$0x3] %vm1917, %v1912
        %s1920 = sand.u32 %s172, 1
        %s1921 = scalar_lea.sflag [#allocation7], %s1920
        %s1922 = sand.u32 %s172, 1
        %s1923 = smul.addr %s1922, 2
        %s1924 = scalar_lea.vmem [#allocation10], %s1923
        // Predicated region
        $region57: #{tpu_custom_call.1} parent=43 // pred_check
          %p1925 = pneg %p182
        $region58: #{tpu_custom_call.1} parent=43 // pred_check_branch
          %1927 = sbr.rel (%p1925) target = $region60
        $region59: #{tpu_custom_call.1} parent=43 // pred_region
          %1929 = vsyncadd %s1921, 0
          %s1930 = smul.addr %s31, 2
          %s1931 = scalar_lea.hbm %s7, %s1930
          %s1933 = sshll.u32 %s1924, 4
          %s1934 = int_to_ptr.vmem [resolvable:$true] %s1933
          %s1935 = sshll.u32 %s1931, 4
          %s1936 = int_to_ptr.hbm [resolvable:$true] %s1935
          %1938 = dma.vmem_to_hbm [thread:$0]  %s1934, 32, %s1936, %s1921
        $region60: #{tpu_custom_call.1} parent=43 // pred_fallthru
          _
      $region44: #{tpu_custom_call.1} parent=5 // pred_fallthru
        _
      %p1939 = scmp.le.s32.totalorder 2, %s26
      // Predicated region
      $region61: #{tpu_custom_call.1} parent=5 // pred_check
        %p1940 = pneg %p1939
      $region62: #{tpu_custom_call.1} parent=5 // pred_check_branch
        %1942 = sbr.rel (%p1940) target = $region64
      $region63: #{tpu_custom_call.1} parent=5 // pred_region
        %s1943 = ssub.s32 %s26, 2
        // Predicated region
        $region65: #{tpu_custom_call.1} parent=63 // pred_check
          %p1944 = pneg %p188
        $region66: #{tpu_custom_call.1} parent=63 // pred_check_branch
          %1946 = sbr.rel (%p1944) target = $region68
        $region67: #{tpu_custom_call.1} parent=63 // pred_region
          %s1947 = sand.u32 %s173, 1
          %s1948 = scalar_lea.sflag [#allocation7], %s1947
          %s1949 = sand.u32 %s173, 1
          %s1950 = smul.addr %s1949, 2
          %s1951 = scalar_lea.vmem [#allocation10], %s1950
          %1953 = dma.done %s1948, 32
        $region68: #{tpu_custom_call.1} parent=63 // pred_fallthru
          _
      $region64: #{tpu_custom_call.1} parent=5 // pred_fallthru
        _
    $region6: #{tpu_custom_call.1} parent=1 // loop_footer
      %s30 = sadd.s32 1, %s26
    $region7: #{tpu_custom_call.1} parent=1 // loop_footer_branch
      %25 = sbr.rel target = $region3
    $region8: #{tpu_custom_call.1} parent=1 // loop_exit
      _
    %1954 = vsyncpa [#allocation6], 1
    %s1955 = scalar_lea.sflag [#allocation6], 1
    %1956 = vsyncpa %s1955, 1
    %1957 = vsyncpa [#allocation9], 1
    %1958 = vsyncpa [#allocation7], 1
    %s1959 = scalar_lea.sflag [#allocation7], 1
    %1960 = vsyncpa %s1959, 1

</llo_original>
